<compile_context>
chip_gen: v7x
topology: tpu7x:2x2x1
jax: 0.10.0
libtpu: 0.0.40
codegen_flags: <defaults>
</compile_context>

<pallas_src>
import functools
import math

import jax
import jax.numpy as jnp
from jax import lax
from jax.experimental import pallas as pl
from jax.experimental.pallas import tpu as pltpu

SCALE_WEIGHT = 0.5 ** 0.5
LN_EPS = 1e-5


def _pick_tile(m, row_bytes, budget_bytes=4 * 1024 * 1024):
    """Largest row-tile that divides m and keeps per-block bytes under budget."""
    cap = max(8, budget_bytes // max(int(row_bytes), 1))
    for t in (512, 256, 128, 64, 32, 16, 8):
        if t <= m and t <= cap and m % t == 0:
            return t
    return m


# --------------------------- K1: LN1 + QKV matmul ---------------------------

def _ln_qkv_kernel(x_ref, g_ref, b_ref, w_ref, x1_ref, qkv_ref):
    x = x_ref[...].astype(jnp.float32)
    mean = jnp.mean(x, axis=-1, keepdims=True)
    xc = x - mean
    var = jnp.mean(xc * xc, axis=-1, keepdims=True)
    xn = xc * lax.rsqrt(var + LN_EPS) * g_ref[...] + b_ref[...]
    x1_ref[...] = xn
    qkv_ref[...] = jnp.dot(xn.astype(jnp.bfloat16), w_ref[...],
                           preferred_element_type=jnp.float32)


def ln_qkv(x, gamma, beta, w_qkv):
    """x:(M,D) -> (LN1(x):(M,D), LN1(x)@Wqkv:(M,3D))."""
    M, D = x.shape
    N = w_qkv.shape[1]
    tm = _pick_tile(M, 4 * (2 * D + N))
    x1, qkv = pl.pallas_call(
        _ln_qkv_kernel,
        out_shape=(jax.ShapeDtypeStruct((M, D), jnp.float32),
                   jax.ShapeDtypeStruct((M, N), jnp.float32)),
        grid=(M // tm,),
        in_specs=[
            pl.BlockSpec((tm, D), lambda i: (i, 0)),
            pl.BlockSpec((1, D), lambda i: (0, 0)),
            pl.BlockSpec((1, D), lambda i: (0, 0)),
            pl.BlockSpec((D, N), lambda i: (0, 0)),
        ],
        out_specs=(pl.BlockSpec((tm, D), lambda i: (i, 0)),
                   pl.BlockSpec((tm, N), lambda i: (i, 0))),
        compiler_params=pltpu.CompilerParams(
            dimension_semantics=("parallel",)),
    )(x, gamma, beta, w_qkv)
    return x1, qkv


# ----------------------- K2: multi-head self-attention ----------------------

def _attention_kernel(qkv_ref, ctx_ref, attn_ref, *, nheads, d_head):
    D = nheads * d_head
    scale = 1.0 / math.sqrt(d_head)
    qkv = qkv_ref[...]
    for h in range(nheads):
        q = qkv[:, h * d_head:(h + 1) * d_head]
        k = qkv[:, D + h * d_head:D + (h + 1) * d_head]
        v = qkv[:, 2 * D + h * d_head:2 * D + (h + 1) * d_head]
        s = lax.dot_general(q.astype(jnp.bfloat16), k.astype(jnp.bfloat16),
                            (((1,), (1,)), ((), ())),
                            preferred_element_type=jnp.float32) * scale
        m = jnp.max(s, axis=-1, keepdims=True)
        p = jnp.exp(s - m)
        p = p / jnp.sum(p, axis=-1, keepdims=True)
        attn_ref[h, :, :] = p
        ctx_ref[:, h * d_head:(h + 1) * d_head] = jnp.dot(
            p.astype(jnp.bfloat16), v.astype(jnp.bfloat16),
            preferred_element_type=jnp.float32)


def attention(qkv_btd, nheads):
    """qkv:(B,T,3D) -> ctx:(B,T,D), attn:(B,nheads,T,T)."""
    B, T, threeD = qkv_btd.shape
    D = threeD // 3
    d_head = D // nheads
    ctx, attn = pl.pallas_call(
        functools.partial(_attention_kernel, nheads=nheads, d_head=d_head),
        out_shape=(jax.ShapeDtypeStruct((B, T, D), jnp.float32),
                   jax.ShapeDtypeStruct((B, nheads, T, T), jnp.float32)),
        grid=(B,),
        in_specs=[pl.BlockSpec((None, T, threeD), lambda b: (b, 0, 0))],
        out_specs=(pl.BlockSpec((None, T, D), lambda b: (b, 0, 0)),
                   pl.BlockSpec((None, nheads, T, T), lambda b: (b, 0, 0, 0))),
        compiler_params=pltpu.CompilerParams(
            dimension_semantics=("parallel",)),
    )(qkv_btd)
    return ctx, attn


# ---------------- K3: out-proj + residual + LN2 + GLU linear -----------------

def _proj_ln_glu_kernel(ctx_ref, wo_ref, x1_ref, g_ref, b_ref,
                        wg_ref, bg_ref, x2_ref, h_ref):
    a = jnp.dot(ctx_ref[...].astype(jnp.bfloat16), wo_ref[...],
                preferred_element_type=jnp.float32)
    x2 = (x1_ref[...] + a) * SCALE_WEIGHT
    x2_ref[...] = x2
    mean = jnp.mean(x2, axis=-1, keepdims=True)
    xc = x2 - mean
    var = jnp.mean(xc * xc, axis=-1, keepdims=True)
    xn = xc * lax.rsqrt(var + LN_EPS) * g_ref[...] + b_ref[...]
    h_ref[...] = (jnp.dot(xn.astype(jnp.bfloat16), wg_ref[...],
                          preferred_element_type=jnp.float32) + bg_ref[...])


def proj_ln_glu(ctx, w_o, x1, ln2_g, ln2_b, w_glu, b_glu):
    M, D = ctx.shape
    tm = _pick_tile(M, 4 * 4 * D)
    x2, h = pl.pallas_call(
        _proj_ln_glu_kernel,
        out_shape=(jax.ShapeDtypeStruct((M, D), jnp.float32),
                   jax.ShapeDtypeStruct((M, D), jnp.float32)),
        grid=(M // tm,),
        in_specs=[
            pl.BlockSpec((tm, D), lambda i: (i, 0)),   # ctx
            pl.BlockSpec((D, D), lambda i: (0, 0)),    # Wo^T (bf16)
            pl.BlockSpec((tm, D), lambda i: (i, 0)),   # x1 (LN1 output, residual)
            pl.BlockSpec((1, D), lambda i: (0, 0)),    # ln2 gamma
            pl.BlockSpec((1, D), lambda i: (0, 0)),    # ln2 beta
            pl.BlockSpec((D, D), lambda i: (0, 0)),    # GLU linear W^T (bf16)
            pl.BlockSpec((1, D), lambda i: (0, 0)),    # GLU linear bias
        ],
        out_specs=(pl.BlockSpec((tm, D), lambda i: (i, 0)),
                   pl.BlockSpec((tm, D), lambda i: (i, 0))),
        compiler_params=pltpu.CompilerParams(
            dimension_semantics=("parallel",)),
    )(ctx, w_o, x1, ln2_g, ln2_b, w_glu, b_glu)
    return x2, h


# ------------------ K4: gated conv + GLU/outer residuals --------------------

def _gated_conv_kernel(h_ref, w_ref, b_ref, x2_ref, out_ref, *, ksize, pad):
    T, D = h_ref.shape
    h = h_ref[...]
    acc = jnp.zeros((T, 2 * D), jnp.float32) + b_ref[...]
    row = lax.broadcasted_iota(jnp.int32, (T, D), 0)
    for j in range(ksize):          # static unroll over conv taps
        o = j - pad                 # input offset for this tap
        if o == 0:
            hs = h
        else:
            rolled = pltpu.roll(h, shift=(-o) % T, axis=0)   # rolled[t]=h[(t+o)%T]
            valid = (row + o >= 0) & (row + o < T)           # zero "same" padding
            hs = jnp.where(valid, rolled, 0.0)
        acc = acc + jnp.dot(hs.astype(jnp.bfloat16), w_ref[j],
                            preferred_element_type=jnp.float32)
    out_half = acc[:, :D]
    gate = acc[:, D:]
    gated = out_half * jax.nn.sigmoid(gate)
    glu_out = (h + gated) * SCALE_WEIGHT           # StackedCNN residual * SCALE
    out_ref[...] = (x2_ref[...] + glu_out) * SCALE_WEIGHT   # outer residual


def gated_conv_glu(h_btd, x2_btd, conv_taps, conv_bias):
    B, T, D = h_btd.shape
    k = conv_taps.shape[0]
    assert k % 2 == 1, "glu_kernel must be odd for 'same'-length output"
    pad = k // 2
    return pl.pallas_call(
        functools.partial(_gated_conv_kernel, ksize=k, pad=pad),
        out_shape=jax.ShapeDtypeStruct((B, T, D), jnp.float32),
        grid=(B,),
        in_specs=[
            pl.BlockSpec((None, T, D), lambda b: (b, 0, 0)),      # h
            pl.BlockSpec((k, D, 2 * D), lambda b: (0, 0, 0)),     # conv taps (bf16)
            pl.BlockSpec((1, 2 * D), lambda b: (0, 0)),           # conv bias
            pl.BlockSpec((None, T, D), lambda b: (b, 0, 0)),      # x2 residual
        ],
        out_specs=pl.BlockSpec((None, T, D), lambda b: (b, 0, 0)),
        compiler_params=pltpu.CompilerParams(
            dimension_semantics=("parallel",)),
    )(h_btd, conv_taps, conv_bias, x2_btd)


# ------------------------------- forward pass -------------------------------

def transformer_glu_forward(prep, src, *, nheads):
    """src: (B, T, d_model) -> (out: (B, T, d_model), attn: (B, nheads, T, T))."""
    B, T, D = src.shape
    M = B * T
    x = src.reshape(M, D).astype(jnp.float32)

    # norm1 + fused QKV projection
    x1, qkv = ln_qkv(x, prep["ln1_g"], prep["ln1_b"], prep["w_qkv"])

    # multi-head scaled dot-product attention (no masks: defaults are None)
    ctx, attn = attention(qkv.reshape(B, T, 3 * D), nheads)

    # output projection + residual*SCALE + norm2 + GLU linear
    # TODO(synk): dropout1/dropout2 and the GatedConv dropout are identity (eval).
    x2, h = proj_ln_glu(ctx.reshape(M, D), prep["w_o"], x1,
                        prep["ln2_g"], prep["ln2_b"],
                        prep["w_glu"], prep["b_glu"])

    # gated conv (GLU block) + GLU residual*SCALE + outer residual*SCALE
    out = gated_conv_glu(h.reshape(B, T, D), x2.reshape(B, T, D),
                         prep["conv_taps"], prep["conv_b"])
    return out, attn


# ------------------------------- parameters ---------------------------------

def init_raw_params(key, d_model, glu_kernel):
    """Parameters in PyTorch layout (Linear: (out,in); Conv2d: (out,in,kh,kw))."""
    keys = iter(jax.random.split(key, 16))

    def nrm(shape, scale=0.1):
        return scale * jax.random.normal(next(keys), shape, jnp.float32)

    D = d_model
    return {
        "ln1_g": 1.0 + nrm((D,)), "ln1_b": nrm((D,)),
        "wq": nrm((D, D)), "wk": nrm((D, D)), "wv": nrm((D, D)), "wo": nrm((D, D)),
        "ln2_g": 1.0 + nrm((D,)), "ln2_b": nrm((D,)),
        "glu_w": nrm((D, D)), "glu_b": nrm((D,)),
        "conv_w": nrm((2 * D, D, glu_kernel, 1)),
        "conv_b": nrm((2 * D,)),
    }


def prepare_params(raw):
    """One-time layout/cast prep so the jitted forward does zero weight reshuffling."""
    D = raw["wq"].shape[0]
    w_qkv = jnp.concatenate([raw["wq"].T, raw["wk"].T, raw["wv"].T], axis=1)  # (D,3D)
    conv_taps = jnp.transpose(raw["conv_w"][:, :, :, 0], (2, 1, 0))           # (k,D,2D)
    return {
        "ln1_g": raw["ln1_g"].reshape(1, D).astype(jnp.float32),
        "ln1_b": raw["ln1_b"].reshape(1, D).astype(jnp.float32),
        "w_qkv": w_qkv.astype(jnp.bfloat16),
        "w_o": raw["wo"].T.astype(jnp.bfloat16),
        "ln2_g": raw["ln2_g"].reshape(1, D).astype(jnp.float32),
        "ln2_b": raw["ln2_b"].reshape(1, D).astype(jnp.float32),
        "w_glu": raw["glu_w"].T.astype(jnp.bfloat16),
        "b_glu": raw["glu_b"].reshape(1, D).astype(jnp.float32),
        "conv_taps": conv_taps.astype(jnp.bfloat16),
        "conv_b": raw["conv_b"].reshape(1, 2 * D).astype(jnp.float32),
    }


# ---------------------------------- main -------------------------------------

if __name__ == "__main__":
    B, T = 2, 8
    d_model, nhead, glu_kernel = 32, 4, 3

    key = jax.random.PRNGKey(0)
    k_param, k_x = jax.random.split(key)
    raw = init_raw_params(k_param, d_model, glu_kernel)
    prep = prepare_params(raw)
    src = jax.random.normal(k_x, (B, T, d_model), jnp.float32)

    fwd = jax.jit(functools.partial(transformer_glu_forward, nheads=nhead))
    out, attn = jax.block_until_ready(fwd(prep, src))

    assert out.shape == (B, T, d_model), out.shape
    assert attn.shape == (B, nhead, T, T), attn.shape
    assert out.dtype == jnp.float32
    assert bool(jnp.all(jnp.isfinite(out)))
    assert bool(jnp.all(jnp.isfinite(attn)))
    print("KERNEL_OK")
</pallas_src>

<mosaic_0001>
module attributes {stable_mosaic.version = 11 : i64} {
  func.func @_attention_kernel(%arg0: i32, %arg1: memref<1x8x96xf32, #tpu.memory_space<vmem>>, %arg2: memref<1x8x32xf32, #tpu.memory_space<vmem>>, %arg3: memref<1x4x8x8xf32, #tpu.memory_space<vmem>>) attributes {dimension_semantics = [#tpu.dimension_semantics<parallel>], iteration_bounds = array<i64: 2>, scalar_prefetch = 0 : i64, scratch_operands = 0 : i64, tpu.core_type = #tpu.core_type<tc>, window_params = [{transform_indices = @transform_0, window_bounds = array<i64: 1, 8, 96>}, {transform_indices = @transform_1, window_bounds = array<i64: 1, 8, 32>}, {transform_indices = @transform_2, window_bounds = array<i64: 1, 4, 8, 8>}]} {
    %c0 = arith.constant 0 : index
    %c0_0 = arith.constant 0 : index
    %c0_1 = arith.constant 0 : index
    %0 = vector.load %arg1[%c0, %c0_0, %c0_1] : memref<1x8x96xf32, #tpu.memory_space<vmem>>, vector<1x8x96xf32>
    %1 = vector.shape_cast %0 : vector<1x8x96xf32> to vector<8x96xf32>
    %2 = vector.extract_strided_slice %1 {offsets = [0, 0], sizes = [8, 8], strides = [1, 1]} : vector<8x96xf32> to vector<8x8xf32>
    %3 = vector.extract_strided_slice %1 {offsets = [0, 32], sizes = [8, 8], strides = [1, 1]} : vector<8x96xf32> to vector<8x8xf32>
    %4 = vector.extract_strided_slice %1 {offsets = [0, 64], sizes = [8, 8], strides = [1, 1]} : vector<8x96xf32> to vector<8x8xf32>
    %5 = arith.truncf %2 : vector<8x8xf32> to vector<8x8xbf16>
    %6 = arith.truncf %3 : vector<8x8xf32> to vector<8x8xbf16>
    %cst = arith.constant dense<0.000000e+00> : vector<8x8xf32>
    %7 = tpu.matmul %5, %6, %cst {dimension_numbers = #tpu.dot_dimension_numbers<[1], [1], [0], [0], [0, 0, 1, 0], [], []>} : vector<8x8xbf16>, vector<8x8xbf16>, vector<8x8xf32> -> vector<8x8xf32>
    %cst_2 = arith.constant 0.353553385 : f32
    %8 = vector.broadcast %cst_2 : f32 to vector<8x8xf32>
    %9 = arith.mulf %7, %8 : vector<8x8xf32>
    %cst_3 = arith.constant dense<0xFF800000> : vector<8xf32>
    %10 = vector.multi_reduction <maximumf>, %9, %cst_3 [1] : vector<8x8xf32> to vector<8xf32>
    %11 = vector.shape_cast %10 : vector<8xf32> to vector<8x1xf32>
    %12 = vector.broadcast %11 : vector<8x1xf32> to vector<8x8xf32>
    %13 = arith.subf %9, %12 : vector<8x8xf32>
    %14 = math.exp %13 : vector<8x8xf32>
    %cst_4 = arith.constant dense<0.000000e+00> : vector<8xf32>
    %15 = vector.multi_reduction <add>, %14, %cst_4 [1] : vector<8x8xf32> to vector<8xf32>
    %16 = vector.shape_cast %15 : vector<8xf32> to vector<8x1xf32>
    %17 = vector.broadcast %16 : vector<8x1xf32> to vector<8x8xf32>
    %18 = arith.divf %14, %17 : vector<8x8xf32>
    %c0_5 = arith.constant 0 : index
    %c0_6 = arith.constant 0 : index
    %c0_7 = arith.constant 0 : index
    %c0_8 = arith.constant 0 : index
    %19 = vector.load %arg3[%c0_5, %c0_6, %c0_7, %c0_8] : memref<1x4x8x8xf32, #tpu.memory_space<vmem>>, vector<1x1x8x8xf32>
    %20 = vector.shape_cast %19 : vector<1x1x8x8xf32> to vector<8x8xf32>
    %21 = vector.shape_cast %18 : vector<8x8xf32> to vector<1x1x8x8xf32>
    tpu.vector_store %arg3[%c0_5, %c0_6, %c0_7, %c0_8], %21 {strides = array<i32>} : memref<1x4x8x8xf32, #tpu.memory_space<vmem>>, vector<1x1x8x8xf32>,
    %22 = arith.truncf %18 : vector<8x8xf32> to vector<8x8xbf16>
    %23 = arith.truncf %4 : vector<8x8xf32> to vector<8x8xbf16>
    %cst_9 = arith.constant dense<0.000000e+00> : vector<8x8xf32>
    %24 = tpu.matmul %22, %23, %cst_9 {dimension_numbers = #tpu.dot_dimension_numbers<[1], [0], [0], [1], [0, 0, 1, 1], [], []>} : vector<8x8xbf16>, vector<8x8xbf16>, vector<8x8xf32> -> vector<8x8xf32>
    %c0_10 = arith.constant 0 : index
    %c0_11 = arith.constant 0 : index
    %c0_12 = arith.constant 0 : index
    %25 = vector.load %arg2[%c0_10, %c0_11, %c0_12] : memref<1x8x32xf32, #tpu.memory_space<vmem>>, vector<1x8x8xf32>
    %26 = vector.shape_cast %25 : vector<1x8x8xf32> to vector<8x8xf32>
    %27 = vector.shape_cast %24 : vector<8x8xf32> to vector<1x8x8xf32>
    tpu.vector_store %arg2[%c0_10, %c0_11, %c0_12], %27 {strides = array<i32>} : memref<1x8x32xf32, #tpu.memory_space<vmem>>, vector<1x8x8xf32>,
    %28 = vector.extract_strided_slice %1 {offsets = [0, 8], sizes = [8, 8], strides = [1, 1]} : vector<8x96xf32> to vector<8x8xf32>
    %29 = vector.extract_strided_slice %1 {offsets = [0, 40], sizes = [8, 8], strides = [1, 1]} : vector<8x96xf32> to vector<8x8xf32>
    %30 = vector.extract_strided_slice %1 {offsets = [0, 72], sizes = [8, 8], strides = [1, 1]} : vector<8x96xf32> to vector<8x8xf32>
    %31 = arith.truncf %28 : vector<8x8xf32> to vector<8x8xbf16>
    %32 = arith.truncf %29 : vector<8x8xf32> to vector<8x8xbf16>
    %cst_13 = arith.constant dense<0.000000e+00> : vector<8x8xf32>
    %33 = tpu.matmul %31, %32, %cst_13 {dimension_numbers = #tpu.dot_dimension_numbers<[1], [1], [0], [0], [0, 0, 1, 0], [], []>} : vector<8x8xbf16>, vector<8x8xbf16>, vector<8x8xf32> -> vector<8x8xf32>
    %cst_14 = arith.constant 0.353553385 : f32
    %34 = vector.broadcast %cst_14 : f32 to vector<8x8xf32>
    %35 = arith.mulf %33, %34 : vector<8x8xf32>
    %cst_15 = arith.constant dense<0xFF800000> : vector<8xf32>
    %36 = vector.multi_reduction <maximumf>, %35, %cst_15 [1] : vector<8x8xf32> to vector<8xf32>
    %37 = vector.shape_cast %36 : vector<8xf32> to vector<8x1xf32>
    %38 = vector.broadcast %37 : vector<8x1xf32> to vector<8x8xf32>
    %39 = arith.subf %35, %38 : vector<8x8xf32>
    %40 = math.exp %39 : vector<8x8xf32>
    %cst_16 = arith.constant dense<0.000000e+00> : vector<8xf32>
    %41 = vector.multi_reduction <add>, %40, %cst_16 [1] : vector<8x8xf32> to vector<8xf32>
    %42 = vector.shape_cast %41 : vector<8xf32> to vector<8x1xf32>
    %43 = vector.broadcast %42 : vector<8x1xf32> to vector<8x8xf32>
    %44 = arith.divf %40, %43 : vector<8x8xf32>
    %c0_17 = arith.constant 0 : index
    %c1 = arith.constant 1 : index
    %c0_18 = arith.constant 0 : index
    %c0_19 = arith.constant 0 : index
    %45 = vector.load %arg3[%c0_17, %c1, %c0_18, %c0_19] : memref<1x4x8x8xf32, #tpu.memory_space<vmem>>, vector<1x1x8x8xf32>
    %46 = vector.shape_cast %45 : vector<1x1x8x8xf32> to vector<8x8xf32>
    %47 = vector.shape_cast %44 : vector<8x8xf32> to vector<1x1x8x8xf32>
    tpu.vector_store %arg3[%c0_17, %c1, %c0_18, %c0_19], %47 {strides = array<i32>} : memref<1x4x8x8xf32, #tpu.memory_space<vmem>>, vector<1x1x8x8xf32>,
    %48 = arith.truncf %44 : vector<8x8xf32> to vector<8x8xbf16>
    %49 = arith.truncf %30 : vector<8x8xf32> to vector<8x8xbf16>
    %cst_20 = arith.constant dense<0.000000e+00> : vector<8x8xf32>
    %50 = tpu.matmul %48, %49, %cst_20 {dimension_numbers = #tpu.dot_dimension_numbers<[1], [0], [0], [1], [0, 0, 1, 1], [], []>} : vector<8x8xbf16>, vector<8x8xbf16>, vector<8x8xf32> -> vector<8x8xf32>
    %c0_21 = arith.constant 0 : index
    %c0_22 = arith.constant 0 : index
    %c8 = arith.constant 8 : index
    %51 = vector.load %arg2[%c0_21, %c0_22, %c8] : memref<1x8x32xf32, #tpu.memory_space<vmem>>, vector<1x8x8xf32>
    %52 = vector.shape_cast %51 : vector<1x8x8xf32> to vector<8x8xf32>
    %53 = vector.shape_cast %50 : vector<8x8xf32> to vector<1x8x8xf32>
    tpu.vector_store %arg2[%c0_21, %c0_22, %c8], %53 {strides = array<i32>} : memref<1x8x32xf32, #tpu.memory_space<vmem>>, vector<1x8x8xf32>,
    %54 = vector.extract_strided_slice %1 {offsets = [0, 16], sizes = [8, 8], strides = [1, 1]} : vector<8x96xf32> to vector<8x8xf32>
    %55 = vector.extract_strided_slice %1 {offsets = [0, 48], sizes = [8, 8], strides = [1, 1]} : vector<8x96xf32> to vector<8x8xf32>
    %56 = vector.extract_strided_slice %1 {offsets = [0, 80], sizes = [8, 8], strides = [1, 1]} : vector<8x96xf32> to vector<8x8xf32>
    %57 = arith.truncf %54 : vector<8x8xf32> to vector<8x8xbf16>
    %58 = arith.truncf %55 : vector<8x8xf32> to vector<8x8xbf16>
    %cst_23 = arith.constant dense<0.000000e+00> : vector<8x8xf32>
    %59 = tpu.matmul %57, %58, %cst_23 {dimension_numbers = #tpu.dot_dimension_numbers<[1], [1], [0], [0], [0, 0, 1, 0], [], []>} : vector<8x8xbf16>, vector<8x8xbf16>, vector<8x8xf32> -> vector<8x8xf32>
    %cst_24 = arith.constant 0.353553385 : f32
    %60 = vector.broadcast %cst_24 : f32 to vector<8x8xf32>
    %61 = arith.mulf %59, %60 : vector<8x8xf32>
    %cst_25 = arith.constant dense<0xFF800000> : vector<8xf32>
    %62 = vector.multi_reduction <maximumf>, %61, %cst_25 [1] : vector<8x8xf32> to vector<8xf32>
    %63 = vector.shape_cast %62 : vector<8xf32> to vector<8x1xf32>
    %64 = vector.broadcast %63 : vector<8x1xf32> to vector<8x8xf32>
    %65 = arith.subf %61, %64 : vector<8x8xf32>
    %66 = math.exp %65 : vector<8x8xf32>
    %cst_26 = arith.constant dense<0.000000e+00> : vector<8xf32>
    %67 = vector.multi_reduction <add>, %66, %cst_26 [1] : vector<8x8xf32> to vector<8xf32>
    %68 = vector.shape_cast %67 : vector<8xf32> to vector<8x1xf32>
    %69 = vector.broadcast %68 : vector<8x1xf32> to vector<8x8xf32>
    %70 = arith.divf %66, %69 : vector<8x8xf32>
    %c0_27 = arith.constant 0 : index
    %c2 = arith.constant 2 : index
    %c0_28 = arith.constant 0 : index
    %c0_29 = arith.constant 0 : index
    %71 = vector.load %arg3[%c0_27, %c2, %c0_28, %c0_29] : memref<1x4x8x8xf32, #tpu.memory_space<vmem>>, vector<1x1x8x8xf32>
    %72 = vector.shape_cast %71 : vector<1x1x8x8xf32> to vector<8x8xf32>
    %73 = vector.shape_cast %70 : vector<8x8xf32> to vector<1x1x8x8xf32>
    tpu.vector_store %arg3[%c0_27, %c2, %c0_28, %c0_29], %73 {strides = array<i32>} : memref<1x4x8x8xf32, #tpu.memory_space<vmem>>, vector<1x1x8x8xf32>,
    %74 = arith.truncf %70 : vector<8x8xf32> to vector<8x8xbf16>
    %75 = arith.truncf %56 : vector<8x8xf32> to vector<8x8xbf16>
    %cst_30 = arith.constant dense<0.000000e+00> : vector<8x8xf32>
    %76 = tpu.matmul %74, %75, %cst_30 {dimension_numbers = #tpu.dot_dimension_numbers<[1], [0], [0], [1], [0, 0, 1, 1], [], []>} : vector<8x8xbf16>, vector<8x8xbf16>, vector<8x8xf32> -> vector<8x8xf32>
    %c0_31 = arith.constant 0 : index
    %c0_32 = arith.constant 0 : index
    %c16 = arith.constant 16 : index
    %77 = vector.load %arg2[%c0_31, %c0_32, %c16] : memref<1x8x32xf32, #tpu.memory_space<vmem>>, vector<1x8x8xf32>
    %78 = vector.shape_cast %77 : vector<1x8x8xf32> to vector<8x8xf32>
    %79 = vector.shape_cast %76 : vector<8x8xf32> to vector<1x8x8xf32>
    tpu.vector_store %arg2[%c0_31, %c0_32, %c16], %79 {strides = array<i32>} : memref<1x8x32xf32, #tpu.memory_space<vmem>>, vector<1x8x8xf32>,
    %80 = vector.extract_strided_slice %1 {offsets = [0, 24], sizes = [8, 8], strides = [1, 1]} : vector<8x96xf32> to vector<8x8xf32>
    %81 = vector.extract_strided_slice %1 {offsets = [0, 56], sizes = [8, 8], strides = [1, 1]} : vector<8x96xf32> to vector<8x8xf32>
    %82 = vector.extract_strided_slice %1 {offsets = [0, 88], sizes = [8, 8], strides = [1, 1]} : vector<8x96xf32> to vector<8x8xf32>
    %83 = arith.truncf %80 : vector<8x8xf32> to vector<8x8xbf16>
    %84 = arith.truncf %81 : vector<8x8xf32> to vector<8x8xbf16>
    %cst_33 = arith.constant dense<0.000000e+00> : vector<8x8xf32>
    %85 = tpu.matmul %83, %84, %cst_33 {dimension_numbers = #tpu.dot_dimension_numbers<[1], [1], [0], [0], [0, 0, 1, 0], [], []>} : vector<8x8xbf16>, vector<8x8xbf16>, vector<8x8xf32> -> vector<8x8xf32>
    %cst_34 = arith.constant 0.353553385 : f32
    %86 = vector.broadcast %cst_34 : f32 to vector<8x8xf32>
    %87 = arith.mulf %85, %86 : vector<8x8xf32>
    %cst_35 = arith.constant dense<0xFF800000> : vector<8xf32>
    %88 = vector.multi_reduction <maximumf>, %87, %cst_35 [1] : vector<8x8xf32> to vector<8xf32>
    %89 = vector.shape_cast %88 : vector<8xf32> to vector<8x1xf32>
    %90 = vector.broadcast %89 : vector<8x1xf32> to vector<8x8xf32>
    %91 = arith.subf %87, %90 : vector<8x8xf32>
    %92 = math.exp %91 : vector<8x8xf32>
    %cst_36 = arith.constant dense<0.000000e+00> : vector<8xf32>
    %93 = vector.multi_reduction <add>, %92, %cst_36 [1] : vector<8x8xf32> to vector<8xf32>
    %94 = vector.shape_cast %93 : vector<8xf32> to vector<8x1xf32>
    %95 = vector.broadcast %94 : vector<8x1xf32> to vector<8x8xf32>
    %96 = arith.divf %92, %95 : vector<8x8xf32>
    %c0_37 = arith.constant 0 : index
    %c3 = arith.constant 3 : index
    %c0_38 = arith.constant 0 : index
    %c0_39 = arith.constant 0 : index
    %97 = vector.load %arg3[%c0_37, %c3, %c0_38, %c0_39] : memref<1x4x8x8xf32, #tpu.memory_space<vmem>>, vector<1x1x8x8xf32>
    %98 = vector.shape_cast %97 : vector<1x1x8x8xf32> to vector<8x8xf32>
    %99 = vector.shape_cast %96 : vector<8x8xf32> to vector<1x1x8x8xf32>
    tpu.vector_store %arg3[%c0_37, %c3, %c0_38, %c0_39], %99 {strides = array<i32>} : memref<1x4x8x8xf32, #tpu.memory_space<vmem>>, vector<1x1x8x8xf32>,
    %100 = arith.truncf %96 : vector<8x8xf32> to vector<8x8xbf16>
    %101 = arith.truncf %82 : vector<8x8xf32> to vector<8x8xbf16>
    %cst_40 = arith.constant dense<0.000000e+00> : vector<8x8xf32>
    %102 = tpu.matmul %100, %101, %cst_40 {dimension_numbers = #tpu.dot_dimension_numbers<[1], [0], [0], [1], [0, 0, 1, 1], [], []>} : vector<8x8xbf16>, vector<8x8xbf16>, vector<8x8xf32> -> vector<8x8xf32>
    %c0_41 = arith.constant 0 : index
    %c0_42 = arith.constant 0 : index
    %c24 = arith.constant 24 : index
    %103 = vector.load %arg2[%c0_41, %c0_42, %c24] : memref<1x8x32xf32, #tpu.memory_space<vmem>>, vector<1x8x8xf32>
    %104 = vector.shape_cast %103 : vector<1x8x8xf32> to vector<8x8xf32>
    %105 = vector.shape_cast %102 : vector<8x8xf32> to vector<1x8x8xf32>
    tpu.vector_store %arg2[%c0_41, %c0_42, %c24], %105 {strides = array<i32>} : memref<1x8x32xf32, #tpu.memory_space<vmem>>, vector<1x8x8xf32>,
    return
  }
  func.func @transform_0(%arg0: i32) -> (i32, i32, i32) {
    %c0_i32 = arith.constant 0 : i32
    %c0_i32_0 = arith.constant 0 : i32
    %c0_i32_1 = arith.constant 0 : i32
    return %arg0, %c0_i32, %c0_i32_0 : i32, i32, i32
  }
  func.func @transform_1(%arg0: i32) -> (i32, i32, i32) {
    %c0_i32 = arith.constant 0 : i32
    %c0_i32_0 = arith.constant 0 : i32
    %c0_i32_1 = arith.constant 0 : i32
    return %arg0, %c0_i32, %c0_i32_0 : i32, i32, i32
  }
  func.func @transform_2(%arg0: i32) -> (i32, i32, i32, i32) {
    %c0_i32 = arith.constant 0 : i32
    %c0_i32_0 = arith.constant 0 : i32
    %c0_i32_1 = arith.constant 0 : i32
    %c0_i32_2 = arith.constant 0 : i32
    return %arg0, %c0_i32, %c0_i32_0, %c0_i32_1 : i32, i32, i32, i32
  }
}

module attributes {stable_mosaic.version = 11 : i64} {
  func.func @_gated_conv_kernel(%arg0: i32, %arg1: memref<1x8x32xf32, #tpu.memory_space<vmem>>, %arg2: memref<3x32x64xbf16, #tpu.memory_space<vmem>>, %arg3: memref<1x64xf32, #tpu.memory_space<vmem>>, %arg4: memref<1x8x32xf32, #tpu.memory_space<vmem>>, %arg5: memref<1x8x32xf32, #tpu.memory_space<vmem>>) attributes {dimension_semantics = [#tpu.dimension_semantics<parallel>], iteration_bounds = array<i64: 2>, scalar_prefetch = 0 : i64, scratch_operands = 0 : i64, tpu.core_type = #tpu.core_type<tc>, window_params = [{transform_indices = @transform_0, window_bounds = array<i64: 1, 8, 32>}, {pipeline_mode = #tpu.pipeline_mode<synchronous>, transform_indices = @transform_1, window_bounds = array<i64: 3, 32, 64>}, {pipeline_mode = #tpu.pipeline_mode<synchronous>, transform_indices = @transform_2, window_bounds = array<i64: 1, 64>}, {transform_indices = @transform_3, window_bounds = array<i64: 1, 8, 32>}, {transform_indices = @transform_4, window_bounds = array<i64: 1, 8, 32>}]} {
    %c0 = arith.constant 0 : index
    %c0_0 = arith.constant 0 : index
    %c0_1 = arith.constant 0 : index
    %0 = vector.load %arg1[%c0, %c0_0, %c0_1] : memref<1x8x32xf32, #tpu.memory_space<vmem>>, vector<1x8x32xf32>
    %1 = vector.shape_cast %0 : vector<1x8x32xf32> to vector<8x32xf32>
    %cst = arith.constant 0.000000e+00 : f32
    %2 = vector.broadcast %cst : f32 to vector<8x64xf32>
    %c0_2 = arith.constant 0 : index
    %c0_3 = arith.constant 0 : index
    %3 = vector.load %arg3[%c0_2, %c0_3] : memref<1x64xf32, #tpu.memory_space<vmem>>, vector<1x64xf32>
    %4 = vector.broadcast %3 : vector<1x64xf32> to vector<8x64xf32>
    %5 = arith.addf %2, %4 : vector<8x64xf32>
    %6 = tpu.iota {dimensions = array<i32: 0>} : vector<8x32xi32>
    %c1_i32 = arith.constant 1 : i32
    %7 = tpu.dynamic_rotate %1 by %c1_i32 dim 0 : vector<8x32xf32>, i32 -> vector<8x32xf32>
    %c-1_i32 = arith.constant -1 : i32
    %8 = vector.broadcast %c-1_i32 : i32 to vector<8x32xi32>
    %9 = arith.addi %6, %8 : vector<8x32xi32>
    %c0_i32 = arith.constant 0 : i32
    %10 = vector.broadcast %c0_i32 : i32 to vector<8x32xi32>
    %11 = arith.cmpi sge, %9, %10 : vector<8x32xi32>
    %c-1_i32_4 = arith.constant -1 : i32
    %12 = vector.broadcast %c-1_i32_4 : i32 to vector<8x32xi32>
    %13 = arith.addi %6, %12 : vector<8x32xi32>
    %c8_i32 = arith.constant 8 : i32
    %14 = vector.broadcast %c8_i32 : i32 to vector<8x32xi32>
    %15 = arith.cmpi slt, %13, %14 : vector<8x32xi32>
    %16 = arith.andi %11, %15 : vector<8x32xi1>
    %cst_5 = arith.constant 0.000000e+00 : f32
    %17 = vector.broadcast %cst_5 : f32 to vector<8x32xf32>
    %18 = arith.select %16, %7, %17 : vector<8x32xi1>, vector<8x32xf32>
    %19 = arith.truncf %18 : vector<8x32xf32> to vector<8x32xbf16>
    %c0_6 = arith.constant 0 : index
    %c0_7 = arith.constant 0 : index
    %c0_8 = arith.constant 0 : index
    %20 = vector.load %arg2[%c0_6, %c0_7, %c0_8] : memref<3x32x64xbf16, #tpu.memory_space<vmem>>, vector<1x32x64xbf16>
    %21 = vector.shape_cast %20 : vector<1x32x64xbf16> to vector<32x64xbf16>
    %cst_9 = arith.constant dense<0.000000e+00> : vector<8x64xf32>
    %22 = tpu.matmul %19, %21, %cst_9 {dimension_numbers = #tpu.dot_dimension_numbers<[1], [0], [0], [1], [0, 0, 1, 1], [], []>} : vector<8x32xbf16>, vector<32x64xbf16>, vector<8x64xf32> -> vector<8x64xf32>
    %23 = arith.addf %5, %22 : vector<8x64xf32>
    %24 = arith.truncf %1 : vector<8x32xf32> to vector<8x32xbf16>
    %c1 = arith.constant 1 : index
    %c0_10 = arith.constant 0 : index
    %c0_11 = arith.constant 0 : index
    %25 = vector.load %arg2[%c1, %c0_10, %c0_11] : memref<3x32x64xbf16, #tpu.memory_space<vmem>>, vector<1x32x64xbf16>
    %26 = vector.shape_cast %25 : vector<1x32x64xbf16> to vector<32x64xbf16>
    %cst_12 = arith.constant dense<0.000000e+00> : vector<8x64xf32>
    %27 = tpu.matmul %24, %26, %cst_12 {dimension_numbers = #tpu.dot_dimension_numbers<[1], [0], [0], [1], [0, 0, 1, 1], [], []>} : vector<8x32xbf16>, vector<32x64xbf16>, vector<8x64xf32> -> vector<8x64xf32>
    %28 = arith.addf %23, %27 : vector<8x64xf32>
    %c7_i32 = arith.constant 7 : i32
    %29 = tpu.dynamic_rotate %1 by %c7_i32 dim 0 : vector<8x32xf32>, i32 -> vector<8x32xf32>
    %c1_i32_13 = arith.constant 1 : i32
    %30 = vector.broadcast %c1_i32_13 : i32 to vector<8x32xi32>
    %31 = arith.addi %6, %30 : vector<8x32xi32>
    %c0_i32_14 = arith.constant 0 : i32
    %32 = vector.broadcast %c0_i32_14 : i32 to vector<8x32xi32>
    %33 = arith.cmpi sge, %31, %32 : vector<8x32xi32>
    %c1_i32_15 = arith.constant 1 : i32
    %34 = vector.broadcast %c1_i32_15 : i32 to vector<8x32xi32>
    %35 = arith.addi %6, %34 : vector<8x32xi32>
    %c8_i32_16 = arith.constant 8 : i32
    %36 = vector.broadcast %c8_i32_16 : i32 to vector<8x32xi32>
    %37 = arith.cmpi slt, %35, %36 : vector<8x32xi32>
    %38 = arith.andi %33, %37 : vector<8x32xi1>
    %cst_17 = arith.constant 0.000000e+00 : f32
    %39 = vector.broadcast %cst_17 : f32 to vector<8x32xf32>
    %40 = arith.select %38, %29, %39 : vector<8x32xi1>, vector<8x32xf32>
    %41 = arith.truncf %40 : vector<8x32xf32> to vector<8x32xbf16>
    %c2 = arith.constant 2 : index
    %c0_18 = arith.constant 0 : index
    %c0_19 = arith.constant 0 : index
    %42 = vector.load %arg2[%c2, %c0_18, %c0_19] : memref<3x32x64xbf16, #tpu.memory_space<vmem>>, vector<1x32x64xbf16>
    %43 = vector.shape_cast %42 : vector<1x32x64xbf16> to vector<32x64xbf16>
    %cst_20 = arith.constant dense<0.000000e+00> : vector<8x64xf32>
    %44 = tpu.matmul %41, %43, %cst_20 {dimension_numbers = #tpu.dot_dimension_numbers<[1], [0], [0], [1], [0, 0, 1, 1], [], []>} : vector<8x32xbf16>, vector<32x64xbf16>, vector<8x64xf32> -> vector<8x64xf32>
    %45 = arith.addf %28, %44 : vector<8x64xf32>
    %46 = vector.extract_strided_slice %45 {offsets = [0, 0], sizes = [8, 32], strides = [1, 1]} : vector<8x64xf32> to vector<8x32xf32>
    %47 = vector.extract_strided_slice %45 {offsets = [0, 32], sizes = [8, 32], strides = [1, 1]} : vector<8x64xf32> to vector<8x32xf32>
    %48 = arith.negf %47 : vector<8x32xf32>
    %49 = math.exp %48 : vector<8x32xf32>
    %cst_21 = arith.constant 1.000000e+00 : f32
    %50 = vector.broadcast %cst_21 : f32 to vector<8x32xf32>
    %51 = arith.addf %50, %49 : vector<8x32xf32>
    %52 = arith.divf %50, %51 : vector<8x32xf32>
    %53 = arith.mulf %46, %52 : vector<8x32xf32>
    %54 = arith.addf %1, %53 : vector<8x32xf32>
    %cst_22 = arith.constant 0.707106769 : f32
    %55 = vector.broadcast %cst_22 : f32 to vector<8x32xf32>
    %56 = arith.mulf %54, %55 : vector<8x32xf32>
    %c0_23 = arith.constant 0 : index
    %c0_24 = arith.constant 0 : index
    %c0_25 = arith.constant 0 : index
    %57 = vector.load %arg4[%c0_23, %c0_24, %c0_25] : memref<1x8x32xf32, #tpu.memory_space<vmem>>, vector<1x8x32xf32>
    %58 = vector.shape_cast %57 : vector<1x8x32xf32> to vector<8x32xf32>
    %59 = arith.addf %58, %56 : vector<8x32xf32>
    %cst_26 = arith.constant 0.707106769 : f32
    %60 = vector.broadcast %cst_26 : f32 to vector<8x32xf32>
    %61 = arith.mulf %59, %60 : vector<8x32xf32>
    %c0_27 = arith.constant 0 : index
    %c0_28 = arith.constant 0 : index
    %c0_29 = arith.constant 0 : index
    %62 = vector.load %arg5[%c0_27, %c0_28, %c0_29] : memref<1x8x32xf32, #tpu.memory_space<vmem>>, vector<1x8x32xf32>
    %63 = vector.shape_cast %62 : vector<1x8x32xf32> to vector<8x32xf32>
    %64 = vector.shape_cast %61 : vector<8x32xf32> to vector<1x8x32xf32>
    tpu.vector_store %arg5[%c0_27, %c0_28, %c0_29], %64 {strides = array<i32>} : memref<1x8x32xf32, #tpu.memory_space<vmem>>, vector<1x8x32xf32>,
    return
  }
  func.func @transform_0(%arg0: i32) -> (i32, i32, i32) {
    %c0_i32 = arith.constant 0 : i32
    %c0_i32_0 = arith.constant 0 : i32
    %c0_i32_1 = arith.constant 0 : i32
    return %arg0, %c0_i32, %c0_i32_0 : i32, i32, i32
  }
  func.func @transform_1(%arg0: i32) -> (i32, i32, i32) {
    %c0_i32 = arith.constant 0 : i32
    %c0_i32_0 = arith.constant 0 : i32
    %c0_i32_1 = arith.constant 0 : i32
    %c0_i32_2 = arith.constant 0 : i32
    return %c0_i32, %c0_i32_0, %c0_i32_1 : i32, i32, i32
  }
  func.func @transform_2(%arg0: i32) -> (i32, i32) {
    %c0_i32 = arith.constant 0 : i32
    %c0_i32_0 = arith.constant 0 : i32
    %c0_i32_1 = arith.constant 0 : i32
    return %c0_i32, %c0_i32_0 : i32, i32
  }
  func.func @transform_3(%arg0: i32) -> (i32, i32, i32) {
    %c0_i32 = arith.constant 0 : i32
    %c0_i32_0 = arith.constant 0 : i32
    %c0_i32_1 = arith.constant 0 : i32
    return %arg0, %c0_i32, %c0_i32_0 : i32, i32, i32
  }
  func.func @transform_4(%arg0: i32) -> (i32, i32, i32) {
    %c0_i32 = arith.constant 0 : i32
    %c0_i32_0 = arith.constant 0 : i32
    %c0_i32_1 = arith.constant 0 : i32
    return %arg0, %c0_i32, %c0_i32_0 : i32, i32, i32
  }
}

module attributes {stable_mosaic.version = 11 : i64} {
  func.func @_proj_ln_glu_kernel(%arg0: i32, %arg1: memref<16x32xf32, #tpu.memory_space<vmem>>, %arg2: memref<32x32xbf16, #tpu.memory_space<vmem>>, %arg3: memref<16x32xf32, #tpu.memory_space<vmem>>, %arg4: memref<1x32xf32, #tpu.memory_space<vmem>>, %arg5: memref<1x32xf32, #tpu.memory_space<vmem>>, %arg6: memref<32x32xbf16, #tpu.memory_space<vmem>>, %arg7: memref<1x32xf32, #tpu.memory_space<vmem>>, %arg8: memref<16x32xf32, #tpu.memory_space<vmem>>, %arg9: memref<16x32xf32, #tpu.memory_space<vmem>>) attributes {dimension_semantics = [#tpu.dimension_semantics<parallel>], iteration_bounds = array<i64: 1>, scalar_prefetch = 0 : i64, scratch_operands = 0 : i64, tpu.core_type = #tpu.core_type<tc>, window_params = [{transform_indices = @transform_0, window_bounds = array<i64: 16, 32>}, {pipeline_mode = #tpu.pipeline_mode<synchronous>, transform_indices = @transform_1, window_bounds = array<i64: 32, 32>}, {transform_indices = @transform_2, window_bounds = array<i64: 16, 32>}, {pipeline_mode = #tpu.pipeline_mode<synchronous>, transform_indices = @transform_3, window_bounds = array<i64: 1, 32>}, {pipeline_mode = #tpu.pipeline_mode<synchronous>, transform_indices = @transform_4, window_bounds = array<i64: 1, 32>}, {pipeline_mode = #tpu.pipeline_mode<synchronous>, transform_indices = @transform_5, window_bounds = array<i64: 32, 32>}, {pipeline_mode = #tpu.pipeline_mode<synchronous>, transform_indices = @transform_6, window_bounds = array<i64: 1, 32>}, {transform_indices = @transform_7, window_bounds = array<i64: 16, 32>}, {transform_indices = @transform_8, window_bounds = array<i64: 16, 32>}]} {
    %c0 = arith.constant 0 : index
    %c0_0 = arith.constant 0 : index
    %0 = vector.load %arg1[%c0, %c0_0] : memref<16x32xf32, #tpu.memory_space<vmem>>, vector<16x32xf32>
    %1 = arith.truncf %0 : vector<16x32xf32> to vector<16x32xbf16>
    %c0_1 = arith.constant 0 : index
    %c0_2 = arith.constant 0 : index
    %2 = vector.load %arg2[%c0_1, %c0_2] : memref<32x32xbf16, #tpu.memory_space<vmem>>, vector<32x32xbf16>
    %cst = arith.constant dense<0.000000e+00> : vector<16x32xf32>
    %3 = tpu.matmul %1, %2, %cst {dimension_numbers = #tpu.dot_dimension_numbers<[1], [0], [0], [1], [0, 0, 1, 1], [], []>} : vector<16x32xbf16>, vector<32x32xbf16>, vector<16x32xf32> -> vector<16x32xf32>
    %c0_3 = arith.constant 0 : index
    %c0_4 = arith.constant 0 : index
    %4 = vector.load %arg3[%c0_3, %c0_4] : memref<16x32xf32, #tpu.memory_space<vmem>>, vector<16x32xf32>
    %5 = arith.addf %4, %3 : vector<16x32xf32>
    %cst_5 = arith.constant 0.707106769 : f32
    %6 = vector.broadcast %cst_5 : f32 to vector<16x32xf32>
    %7 = arith.mulf %5, %6 : vector<16x32xf32>
    %c0_6 = arith.constant 0 : index
    %c0_7 = arith.constant 0 : index
    %8 = vector.load %arg8[%c0_6, %c0_7] : memref<16x32xf32, #tpu.memory_space<vmem>>, vector<16x32xf32>
    tpu.vector_store %arg8[%c0_6, %c0_7], %7 {strides = array<i32>} : memref<16x32xf32, #tpu.memory_space<vmem>>, vector<16x32xf32>,
    %cst_8 = arith.constant dense<0.000000e+00> : vector<16xf32>
    %9 = vector.multi_reduction <add>, %7, %cst_8 [1] : vector<16x32xf32> to vector<16xf32>
    %10 = vector.shape_cast %9 : vector<16xf32> to vector<16x1xf32>
    %cst_9 = arith.constant 3.200000e+01 : f32
    %11 = vector.broadcast %cst_9 : f32 to vector<16x1xf32>
    %12 = arith.divf %10, %11 : vector<16x1xf32>
    %13 = vector.broadcast %12 : vector<16x1xf32> to vector<16x32xf32>
    %14 = arith.subf %7, %13 : vector<16x32xf32>
    %15 = arith.mulf %14, %14 : vector<16x32xf32>
    %cst_10 = arith.constant dense<0.000000e+00> : vector<16xf32>
    %16 = vector.multi_reduction <add>, %15, %cst_10 [1] : vector<16x32xf32> to vector<16xf32>
    %17 = vector.shape_cast %16 : vector<16xf32> to vector<16x1xf32>
    %cst_11 = arith.constant 3.200000e+01 : f32
    %18 = vector.broadcast %cst_11 : f32 to vector<16x1xf32>
    %19 = arith.divf %17, %18 : vector<16x1xf32>
    %cst_12 = arith.constant 9.99999974E-6 : f32
    %20 = vector.broadcast %cst_12 : f32 to vector<16x1xf32>
    %21 = arith.addf %19, %20 : vector<16x1xf32>
    %22 = math.rsqrt %21 : vector<16x1xf32>
    %23 = vector.broadcast %22 : vector<16x1xf32> to vector<16x32xf32>
    %24 = arith.mulf %14, %23 : vector<16x32xf32>
    %c0_13 = arith.constant 0 : index
    %c0_14 = arith.constant 0 : index
    %25 = vector.load %arg4[%c0_13, %c0_14] : memref<1x32xf32, #tpu.memory_space<vmem>>, vector<1x32xf32>
    %26 = vector.broadcast %25 : vector<1x32xf32> to vector<16x32xf32>
    %27 = arith.mulf %24, %26 : vector<16x32xf32>
    %c0_15 = arith.constant 0 : index
    %c0_16 = arith.constant 0 : index
    %28 = vector.load %arg5[%c0_15, %c0_16] : memref<1x32xf32, #tpu.memory_space<vmem>>, vector<1x32xf32>
    %29 = vector.broadcast %28 : vector<1x32xf32> to vector<16x32xf32>
    %30 = arith.addf %27, %29 : vector<16x32xf32>
    %31 = arith.truncf %30 : vector<16x32xf32> to vector<16x32xbf16>
    %c0_17 = arith.constant 0 : index
    %c0_18 = arith.constant 0 : index
    %32 = vector.load %arg6[%c0_17, %c0_18] : memref<32x32xbf16, #tpu.memory_space<vmem>>, vector<32x32xbf16>
    %cst_19 = arith.constant dense<0.000000e+00> : vector<16x32xf32>
    %33 = tpu.matmul %31, %32, %cst_19 {dimension_numbers = #tpu.dot_dimension_numbers<[1], [0], [0], [1], [0, 0, 1, 1], [], []>} : vector<16x32xbf16>, vector<32x32xbf16>, vector<16x32xf32> -> vector<16x32xf32>
    %c0_20 = arith.constant 0 : index
    %c0_21 = arith.constant 0 : index
    %34 = vector.load %arg7[%c0_20, %c0_21] : memref<1x32xf32, #tpu.memory_space<vmem>>, vector<1x32xf32>
    %35 = vector.broadcast %34 : vector<1x32xf32> to vector<16x32xf32>
    %36 = arith.addf %33, %35 : vector<16x32xf32>
    %c0_22 = arith.constant 0 : index
    %c0_23 = arith.constant 0 : index
    %37 = vector.load %arg9[%c0_22, %c0_23] : memref<16x32xf32, #tpu.memory_space<vmem>>, vector<16x32xf32>
    tpu.vector_store %arg9[%c0_22, %c0_23], %36 {strides = array<i32>} : memref<16x32xf32, #tpu.memory_space<vmem>>, vector<16x32xf32>,
    return
  }
  func.func @transform_0(%arg0: i32) -> (i32, i32) {
    %c0_i32 = arith.constant 0 : i32
    %c0_i32_0 = arith.constant 0 : i32
    return %arg0, %c0_i32 : i32, i32
  }
  func.func @transform_1(%arg0: i32) -> (i32, i32) {
    %c0_i32 = arith.constant 0 : i32
    %c0_i32_0 = arith.constant 0 : i32
    %c0_i32_1 = arith.constant 0 : i32
    return %c0_i32, %c0_i32_0 : i32, i32
  }
  func.func @transform_2(%arg0: i32) -> (i32, i32) {
    %c0_i32 = arith.constant 0 : i32
    %c0_i32_0 = arith.constant 0 : i32
    return %arg0, %c0_i32 : i32, i32
  }
  func.func @transform_3(%arg0: i32) -> (i32, i32) {
    %c0_i32 = arith.constant 0 : i32
    %c0_i32_0 = arith.constant 0 : i32
    %c0_i32_1 = arith.constant 0 : i32
    return %c0_i32, %c0_i32_0 : i32, i32
  }
  func.func @transform_4(%arg0: i32) -> (i32, i32) {
    %c0_i32 = arith.constant 0 : i32
    %c0_i32_0 = arith.constant 0 : i32
    %c0_i32_1 = arith.constant 0 : i32
    return %c0_i32, %c0_i32_0 : i32, i32
  }
  func.func @transform_5(%arg0: i32) -> (i32, i32) {
    %c0_i32 = arith.constant 0 : i32
    %c0_i32_0 = arith.constant 0 : i32
    %c0_i32_1 = arith.constant 0 : i32
    return %c0_i32, %c0_i32_0 : i32, i32
  }
  func.func @transform_6(%arg0: i32) -> (i32, i32) {
    %c0_i32 = arith.constant 0 : i32
    %c0_i32_0 = arith.constant 0 : i32
    %c0_i32_1 = arith.constant 0 : i32
    return %c0_i32, %c0_i32_0 : i32, i32
  }
  func.func @transform_7(%arg0: i32) -> (i32, i32) {
    %c0_i32 = arith.constant 0 : i32
    %c0_i32_0 = arith.constant 0 : i32
    return %arg0, %c0_i32 : i32, i32
  }
  func.func @transform_8(%arg0: i32) -> (i32, i32) {
    %c0_i32 = arith.constant 0 : i32
    %c0_i32_0 = arith.constant 0 : i32
    return %arg0, %c0_i32 : i32, i32
  }
}

module attributes {stable_mosaic.version = 11 : i64} {
  func.func @_ln_qkv_kernel(%arg0: i32, %arg1: memref<16x32xf32, #tpu.memory_space<vmem>>, %arg2: memref<1x32xf32, #tpu.memory_space<vmem>>, %arg3: memref<1x32xf32, #tpu.memory_space<vmem>>, %arg4: memref<32x96xbf16, #tpu.memory_space<vmem>>, %arg5: memref<16x32xf32, #tpu.memory_space<vmem>>, %arg6: memref<16x96xf32, #tpu.memory_space<vmem>>) attributes {dimension_semantics = [#tpu.dimension_semantics<parallel>], iteration_bounds = array<i64: 1>, scalar_prefetch = 0 : i64, scratch_operands = 0 : i64, tpu.core_type = #tpu.core_type<tc>, window_params = [{transform_indices = @transform_0, window_bounds = array<i64: 16, 32>}, {pipeline_mode = #tpu.pipeline_mode<synchronous>, transform_indices = @transform_1, window_bounds = array<i64: 1, 32>}, {pipeline_mode = #tpu.pipeline_mode<synchronous>, transform_indices = @transform_2, window_bounds = array<i64: 1, 32>}, {pipeline_mode = #tpu.pipeline_mode<synchronous>, transform_indices = @transform_3, window_bounds = array<i64: 32, 96>}, {transform_indices = @transform_4, window_bounds = array<i64: 16, 32>}, {transform_indices = @transform_5, window_bounds = array<i64: 16, 96>}]} {
    %c0 = arith.constant 0 : index
    %c0_0 = arith.constant 0 : index
    %0 = vector.load %arg1[%c0, %c0_0] : memref<16x32xf32, #tpu.memory_space<vmem>>, vector<16x32xf32>
    %cst = arith.constant dense<0.000000e+00> : vector<16xf32>
    %1 = vector.multi_reduction <add>, %0, %cst [1] : vector<16x32xf32> to vector<16xf32>
    %2 = vector.shape_cast %1 : vector<16xf32> to vector<16x1xf32>
    %cst_1 = arith.constant 3.200000e+01 : f32
    %3 = vector.broadcast %cst_1 : f32 to vector<16x1xf32>
    %4 = arith.divf %2, %3 : vector<16x1xf32>
    %5 = vector.broadcast %4 : vector<16x1xf32> to vector<16x32xf32>
    %6 = arith.subf %0, %5 : vector<16x32xf32>
    %7 = arith.mulf %6, %6 : vector<16x32xf32>
    %cst_2 = arith.constant dense<0.000000e+00> : vector<16xf32>
    %8 = vector.multi_reduction <add>, %7, %cst_2 [1] : vector<16x32xf32> to vector<16xf32>
    %9 = vector.shape_cast %8 : vector<16xf32> to vector<16x1xf32>
    %cst_3 = arith.constant 3.200000e+01 : f32
    %10 = vector.broadcast %cst_3 : f32 to vector<16x1xf32>
    %11 = arith.divf %9, %10 : vector<16x1xf32>
    %cst_4 = arith.constant 9.99999974E-6 : f32
    %12 = vector.broadcast %cst_4 : f32 to vector<16x1xf32>
    %13 = arith.addf %11, %12 : vector<16x1xf32>
    %14 = math.rsqrt %13 : vector<16x1xf32>
    %15 = vector.broadcast %14 : vector<16x1xf32> to vector<16x32xf32>
    %16 = arith.mulf %6, %15 : vector<16x32xf32>
    %c0_5 = arith.constant 0 : index
    %c0_6 = arith.constant 0 : index
    %17 = vector.load %arg2[%c0_5, %c0_6] : memref<1x32xf32, #tpu.memory_space<vmem>>, vector<1x32xf32>
    %18 = vector.broadcast %17 : vector<1x32xf32> to vector<16x32xf32>
    %19 = arith.mulf %16, %18 : vector<16x32xf32>
    %c0_7 = arith.constant 0 : index
    %c0_8 = arith.constant 0 : index
    %20 = vector.load %arg3[%c0_7, %c0_8] : memref<1x32xf32, #tpu.memory_space<vmem>>, vector<1x32xf32>
    %21 = vector.broadcast %20 : vector<1x32xf32> to vector<16x32xf32>
    %22 = arith.addf %19, %21 : vector<16x32xf32>
    %c0_9 = arith.constant 0 : index
    %c0_10 = arith.constant 0 : index
    %23 = vector.load %arg5[%c0_9, %c0_10] : memref<16x32xf32, #tpu.memory_space<vmem>>, vector<16x32xf32>
    tpu.vector_store %arg5[%c0_9, %c0_10], %22 {strides = array<i32>} : memref<16x32xf32, #tpu.memory_space<vmem>>, vector<16x32xf32>,
    %24 = arith.truncf %22 : vector<16x32xf32> to vector<16x32xbf16>
    %c0_11 = arith.constant 0 : index
    %c0_12 = arith.constant 0 : index
    %25 = vector.load %arg4[%c0_11, %c0_12] : memref<32x96xbf16, #tpu.memory_space<vmem>>, vector<32x96xbf16>
    %cst_13 = arith.constant dense<0.000000e+00> : vector<16x96xf32>
    %26 = tpu.matmul %24, %25, %cst_13 {dimension_numbers = #tpu.dot_dimension_numbers<[1], [0], [0], [1], [0, 0, 1, 1], [], []>} : vector<16x32xbf16>, vector<32x96xbf16>, vector<16x96xf32> -> vector<16x96xf32>
    %c0_14 = arith.constant 0 : index
    %c0_15 = arith.constant 0 : index
    %27 = vector.load %arg6[%c0_14, %c0_15] : memref<16x96xf32, #tpu.memory_space<vmem>>, vector<16x96xf32>
    tpu.vector_store %arg6[%c0_14, %c0_15], %26 {strides = array<i32>} : memref<16x96xf32, #tpu.memory_space<vmem>>, vector<16x96xf32>,
    return
  }
  func.func @transform_0(%arg0: i32) -> (i32, i32) {
    %c0_i32 = arith.constant 0 : i32
    %c0_i32_0 = arith.constant 0 : i32
    return %arg0, %c0_i32 : i32, i32
  }
  func.func @transform_1(%arg0: i32) -> (i32, i32) {
    %c0_i32 = arith.constant 0 : i32
    %c0_i32_0 = arith.constant 0 : i32
    %c0_i32_1 = arith.constant 0 : i32
    return %c0_i32, %c0_i32_0 : i32, i32
  }
  func.func @transform_2(%arg0: i32) -> (i32, i32) {
    %c0_i32 = arith.constant 0 : i32
    %c0_i32_0 = arith.constant 0 : i32
    %c0_i32_1 = arith.constant 0 : i32
    return %c0_i32, %c0_i32_0 : i32, i32
  }
  func.func @transform_3(%arg0: i32) -> (i32, i32) {
    %c0_i32 = arith.constant 0 : i32
    %c0_i32_0 = arith.constant 0 : i32
    %c0_i32_1 = arith.constant 0 : i32
    return %c0_i32, %c0_i32_0 : i32, i32
  }
  func.func @transform_4(%arg0: i32) -> (i32, i32) {
    %c0_i32 = arith.constant 0 : i32
    %c0_i32_0 = arith.constant 0 : i32
    return %arg0, %c0_i32 : i32, i32
  }
  func.func @transform_5(%arg0: i32) -> (i32, i32) {
    %c0_i32 = arith.constant 0 : i32
    %c0_i32_0 = arith.constant 0 : i32
    return %arg0, %c0_i32 : i32, i32
  }
}

</mosaic_0001>

<llo_original>
// kernel: transformer_glu_forward.4
$region0: #{transformer_glu_forward.4}
  #allocation0 [shape = 'u32[]', space=smem, size = 0x4, offset = 0x4, fixed_abs, tag = 'smem constant byte address 0x4 - core index']
  #allocation1 [shape = 'u32[144,128]{1,0:T(1,128)}', space=vmem, size = 0x12000, scoped, tag = 'internal scratch']
  %s0 = inlined_call_operand.vmem [shape: f32[16,32], index: 0, kind: input, shape index: {}]
  %s1 = inlined_call_operand.vmem [shape: f32[1,32], index: 1, kind: input, shape index: {}]
  %s2 = inlined_call_operand.vmem [shape: f32[1,32], index: 2, kind: input, shape index: {}]
  %s3 = inlined_call_operand.vmem [shape: bf16[32,96], index: 3, kind: input, shape index: {}]
  %s4 = inlined_call_operand.vmem [shape: f32[16,32], index: 4, kind: output, shape index: {0}]
  %s5 = inlined_call_operand.vmem [shape: f32[16,96], index: 5, kind: output, shape index: {1}]
  %6 = xla_tuple %s4, %s5
  %s7 = sld [smem:[#allocation0]]
  $region34: #{transformer_glu_forward.4} parent=0
    _
  %s9 = ssub.s32 1, %s7
  %s10 = scalar_select 0, %s9, %s7
  // Predicated region
  $region2: #{transformer_glu_forward.4} parent=0 // pred_check
    _
  $region3: #{transformer_glu_forward.4} parent=0 // pred_check_branch
    %12 = sbr.rel (0) target = $region5
  $region4: #{transformer_glu_forward.4} parent=0 // pred_region
    _
  $region5: #{transformer_glu_forward.4} parent=0 // pred_fallthru
    _
  // Predicated region
  $region6: #{transformer_glu_forward.4} parent=0 // pred_check
    _
  $region7: #{transformer_glu_forward.4} parent=0 // pred_check_branch
    %14 = sbr.rel (0) target = $region9
  $region8: #{transformer_glu_forward.4} parent=0 // pred_region
    _
  $region9: #{transformer_glu_forward.4} parent=0 // pred_fallthru
    _
  // Predicated region
  $region10: #{transformer_glu_forward.4} parent=0 // pred_check
    _
  $region11: #{transformer_glu_forward.4} parent=0 // pred_check_branch
    %16 = sbr.rel (0) target = $region13
  $region12: #{transformer_glu_forward.4} parent=0 // pred_region
    _
  $region13: #{transformer_glu_forward.4} parent=0 // pred_fallthru
    _
  // Predicated region
  $region14: #{transformer_glu_forward.4} parent=0 // pred_check
    _
  $region15: #{transformer_glu_forward.4} parent=0 // pred_check_branch
    %18 = sbr.rel (0) target = $region17
  $region16: #{transformer_glu_forward.4} parent=0 // pred_region
    _
  $region17: #{transformer_glu_forward.4} parent=0 // pred_fallthru
    _
  %v20 = vld [vmem:[%s0] sm:$0xff]
  %v21 = vld [vmem:[%s0 + $0x8] sm:$0xff]
  %vm22 = vcmask 261120
  %v23 = vsel %vm22, %v20, 0.0
  %24 = vadd.xlane.f32.xlu0 %v23
  %v25 = vpop.xlane.xlu0 %24
  %v26 = vsel %vm22, %v21, 0.0
  %27 = vadd.xlane.f32.xlu0 %v26
  %v28 = vpop.xlane.xlu0 %27
  %v29 = vrcp.pop 32.0
  %v30 = vmul.f32 %v25, %v29
  %v31 = vmul.f32 %v28, %v29
  %v32 = vsub.f32 %v20, %v30
  %v33 = vsub.f32 %v21, %v31
  %v34 = vmul.f32 %v32, %v32
  %v35 = vmul.f32 %v33, %v33
  %v36 = vsel %vm22, %v34, 0.0
  %37 = vadd.xlane.f32.xlu0 %v36
  %v38 = vpop.xlane.xlu0 %37
  %v39 = vsel %vm22, %v35, 0.0
  %40 = vadd.xlane.f32.xlu0 %v39
  %v41 = vpop.xlane.xlu0 %40
  %v42 = vmul.f32 %v38, %v29
  %v43 = vmul.f32 %v41, %v29
  %v44 = vadd.f32 %v42, 1e-05
  %v45 = vadd.f32 %v43, 1e-05
  %v46 = vrsqrt.pop %v44
  %v47 = vrsqrt.pop %v45
  %v48 = vmul.f32 %v32, %v46
  %v49 = vmul.f32 %v33, %v47
  %v50 = vld [vmem:[%s1] sm:$0x1]
  %v52 = vlaneseq
  %v53 = vshrl.u32 %v52, 7
  %v54 = vsub.s32 0, %v53
  %v55 = vrot.slane %v50, %v54
  %v57 = vmul.f32 %v48, %v55
  %v58 = vmul.f32 %v49, %v55
  %v59 = vld [vmem:[%s2] sm:$0x1]
  %v61 = vlaneseq
  %v62 = vshrl.u32 %v61, 7
  %v63 = vsub.s32 0, %v62
  %v64 = vrot.slane %v59, %v63
  %v66 = vadd.f32 %v57, %v64
  %v67 = vadd.f32 %v58, %v64
  %68 = vst.msk [vmem:[%s4] sm:$0xff] %vm22, %v66
  %69 = vst.msk [vmem:[%s4 + $0x8] sm:$0xff] %vm22, %v67
  %v70 = vpack.c.bf16 %v67, %v66
  %v71 = vld [vmem:[%s3] sm:$0xf]
  %v72 = vld [vmem:[%s3 + $0x4] sm:$0xf]
  %v73 = vld [vmem:[%s3 + $0x8] sm:$0xf]
  %v74 = vld [vmem:[%s3 + $0xc] sm:$0xf]
  %v79 = vunpack.c.l.b16 %v71
  %v80 = vunpack.c.l.b16 %v72
  %v81 = vunpack.c.l.b16 %v73
  %v82 = vunpack.c.l.b16 %v74
  %v83 = vpack.c.b16 %v80, %v79
  %v84 = vpack.c.b16 %v82, %v81
  %v88 = vsel %vm22, %v70, 0
  %90 = vmatprep.subr.bf16.mxu0 0
  %91 = vmatpush1.bf16.msra.mxu0 %v83
  %92 = vmatprep.subr.bf16.mxu0 0
  %93 = vmatpush1.bf16.msra.mxu0 %v84
  %94 = vmatprep.subr.bf16.mxu0 0
  %95 = vmatpush1.bf16.msra.mxu0 0
  %96 = vmatprep.subr.bf16.mxu0 0
  %97 = vmatpush1.bf16.msra.mxu0 0
  %98 = vmatprep.subr.bf16.mxu0 0
  %99 = vmatpush1.bf16.msra.mxu0 0
  %100 = vmatprep.subr.bf16.mxu0 0
  %101 = vmatpush1.bf16.msra.mxu0 0
  %102 = vmatprep.subr.bf16.mxu0 0
  %103 = vmatpush1.bf16.msra.mxu0 0
  %104 = vmatprep.subr.bf16.mxu0 0
  %105 = vmatpush1.bf16.msra.mxu0 0
  %106 = vmatprep.subr.bf16.mxu0 0
  %107 = vmatpush1.bf16.msra.mxu0 0
  %108 = vmatprep.subr.bf16.mxu0 0
  %109 = vmatpush1.bf16.msra.mxu0 0
  %110 = vmatprep.subr.bf16.mxu0 0
  %111 = vmatpush1.bf16.msra.mxu0 0
  %112 = vmatprep.subr.bf16.mxu0 0
  %113 = vmatpush1.bf16.msra.mxu0 0
  %114 = vmatprep.subr.bf16.mxu0 0
  %115 = vmatpush1.bf16.msra.mxu0 0
  %116 = vmatprep.subr.bf16.mxu0 0
  %117 = vmatpush1.bf16.msra.mxu0 0
  %118 = vmatprep.subr.bf16.mxu0 0
  %119 = vmatpush1.bf16.msra.mxu0 0
  %120 = vmatprep.subr.bf16.mxu0 0
  %121 = vmatpush1.bf16.msra.mxu0 0
  %122 = vmatprep.mubr.bf16.mxu0 0
  %123 = vmatmul.mubr.bf16.gmra.mrb[0].mxu0 %v88
  %v124 = vpop.f32.mrb[0].mxu0
  %v125 = vadd.f32 0.0, %v124
  %v126 = vpop.f32.mrb[0].mxu0
  %v127 = vpop.f32.mrb[0].mxu0
  %v128 = vadd.f32 0.0, %v127
  %v129 = vpop.f32.mrb[0].mxu0
  %130 = vdwg.mxu0
  %vm131 = vcmask 785408
  %132 = vst.msk [vmem:[%s5] sm:$0xff] %vm131, %v125
  %133 = vst.msk [vmem:[%s5 + $0x8] sm:$0xff] %vm131, %v128
  // Predicated region
  $region18: #{transformer_glu_forward.4} parent=0 // pred_check
    _
  $region19: #{transformer_glu_forward.4} parent=0 // pred_check_branch
    %135 = sbr.rel (0) target = $region21
  $region20: #{transformer_glu_forward.4} parent=0 // pred_region
    _
  $region21: #{transformer_glu_forward.4} parent=0 // pred_fallthru
    _
  // Predicated region
  $region22: #{transformer_glu_forward.4} parent=0 // pred_check
    _
  $region23: #{transformer_glu_forward.4} parent=0 // pred_check_branch
    %137 = sbr.rel (0) target = $region25
  $region24: #{transformer_glu_forward.4} parent=0 // pred_region
    _
  $region25: #{transformer_glu_forward.4} parent=0 // pred_fallthru
    _
  // Predicated region
  $region26: #{transformer_glu_forward.4} parent=0 // pred_check
    _
  $region27: #{transformer_glu_forward.4} parent=0 // pred_check_branch
    %139 = sbr.rel (0) target = $region29
  $region28: #{transformer_glu_forward.4} parent=0 // pred_region
    _
  $region29: #{transformer_glu_forward.4} parent=0 // pred_fallthru
    _
  // Predicated region
  $region30: #{transformer_glu_forward.4} parent=0 // pred_check
    _
  $region31: #{transformer_glu_forward.4} parent=0 // pred_check_branch
    %141 = sbr.rel (0) target = $region33
  $region32: #{transformer_glu_forward.4} parent=0 // pred_region
    _
  $region33: #{transformer_glu_forward.4} parent=0 // pred_fallthru
    _

// kernel: transformer_glu_forward.6
$region0: #{transformer_glu_forward.6}
  #allocation0 [shape = 'u32[]', space=smem, size = 0x4, offset = 0x4, fixed_abs, tag = 'smem constant byte address 0x4 - core index']
  #allocation1 [shape = 'u32[144,128]{1,0:T(1,128)}', space=vmem, size = 0x12000, scoped, tag = 'internal scratch']
  %s0 = inlined_call_operand.vmem [shape: f32[16,32], index: 0, kind: input, shape index: {}]
  %s1 = inlined_call_operand.vmem [shape: bf16[32,32], index: 1, kind: input, shape index: {}]
  %s2 = inlined_call_operand.vmem [shape: f32[16,32], index: 2, kind: input, shape index: {}]
  %s3 = inlined_call_operand.vmem [shape: f32[1,32], index: 3, kind: input, shape index: {}]
  %s4 = inlined_call_operand.vmem [shape: f32[1,32], index: 4, kind: input, shape index: {}]
  %s5 = inlined_call_operand.vmem [shape: bf16[32,32], index: 5, kind: input, shape index: {}]
  %s6 = inlined_call_operand.vmem [shape: f32[1,32], index: 6, kind: input, shape index: {}]
  %s7 = inlined_call_operand.vmem [shape: f32[16,32], index: 7, kind: output, shape index: {0}]
  %s8 = inlined_call_operand.vmem [shape: f32[16,32], index: 8, kind: output, shape index: {1}]
  %9 = xla_tuple %s7, %s8
  %s10 = sld [smem:[#allocation0]]
  $region46: #{transformer_glu_forward.6} parent=0
    _
  %s12 = ssub.s32 1, %s10
  %s13 = scalar_select 0, %s12, %s10
  // Predicated region
  $region2: #{transformer_glu_forward.6} parent=0 // pred_check
    _
  $region3: #{transformer_glu_forward.6} parent=0 // pred_check_branch
    %15 = sbr.rel (0) target = $region5
  $region4: #{transformer_glu_forward.6} parent=0 // pred_region
    _
  $region5: #{transformer_glu_forward.6} parent=0 // pred_fallthru
    _
  // Predicated region
  $region6: #{transformer_glu_forward.6} parent=0 // pred_check
    _
  $region7: #{transformer_glu_forward.6} parent=0 // pred_check_branch
    %17 = sbr.rel (0) target = $region9
  $region8: #{transformer_glu_forward.6} parent=0 // pred_region
    _
  $region9: #{transformer_glu_forward.6} parent=0 // pred_fallthru
    _
  // Predicated region
  $region10: #{transformer_glu_forward.6} parent=0 // pred_check
    _
  $region11: #{transformer_glu_forward.6} parent=0 // pred_check_branch
    %19 = sbr.rel (0) target = $region13
  $region12: #{transformer_glu_forward.6} parent=0 // pred_region
    _
  $region13: #{transformer_glu_forward.6} parent=0 // pred_fallthru
    _
  // Predicated region
  $region14: #{transformer_glu_forward.6} parent=0 // pred_check
    _
  $region15: #{transformer_glu_forward.6} parent=0 // pred_check_branch
    %21 = sbr.rel (0) target = $region17
  $region16: #{transformer_glu_forward.6} parent=0 // pred_region
    _
  $region17: #{transformer_glu_forward.6} parent=0 // pred_fallthru
    _
  // Predicated region
  $region18: #{transformer_glu_forward.6} parent=0 // pred_check
    _
  $region19: #{transformer_glu_forward.6} parent=0 // pred_check_branch
    %23 = sbr.rel (0) target = $region21
  $region20: #{transformer_glu_forward.6} parent=0 // pred_region
    _
  $region21: #{transformer_glu_forward.6} parent=0 // pred_fallthru
    _
  // Predicated region
  $region22: #{transformer_glu_forward.6} parent=0 // pred_check
    _
  $region23: #{transformer_glu_forward.6} parent=0 // pred_check_branch
    %25 = sbr.rel (0) target = $region25
  $region24: #{transformer_glu_forward.6} parent=0 // pred_region
    _
  $region25: #{transformer_glu_forward.6} parent=0 // pred_fallthru
    _
  // Predicated region
  $region26: #{transformer_glu_forward.6} parent=0 // pred_check
    _
  $region27: #{transformer_glu_forward.6} parent=0 // pred_check_branch
    %27 = sbr.rel (0) target = $region29
  $region28: #{transformer_glu_forward.6} parent=0 // pred_region
    _
  $region29: #{transformer_glu_forward.6} parent=0 // pred_fallthru
    _
  %v29 = vld [vmem:[%s0] sm:$0xff]
  %v30 = vld [vmem:[%s0 + $0x8] sm:$0xff]
  %v31 = vpack.c.bf16 %v30, %v29
  %v32 = vld [vmem:[%s1] sm:$0xf]
  %v33 = vld [vmem:[%s1 + $0x4] sm:$0xf]
  %v34 = vld [vmem:[%s1 + $0x8] sm:$0xf]
  %v35 = vld [vmem:[%s1 + $0xc] sm:$0xf]
  %v40 = vunpack.c.l.b16 %v32
  %v41 = vunpack.c.l.b16 %v33
  %v42 = vunpack.c.l.b16 %v34
  %v43 = vunpack.c.l.b16 %v35
  %v44 = vpack.c.b16 %v41, %v40
  %v45 = vpack.c.b16 %v43, %v42
  %vm48 = vcmask 261120
  %v50 = vsel %vm48, %v31, 0
  %52 = vmatprep.subr.bf16.mxu0 0
  %53 = vmatpush1.bf16.msra.mxu0 %v44
  %54 = vmatprep.subr.bf16.mxu0 0
  %55 = vmatpush1.bf16.msra.mxu0 %v45
  %56 = vmatprep.subr.bf16.mxu0 0
  %57 = vmatpush1.bf16.msra.mxu0 0
  %58 = vmatprep.subr.bf16.mxu0 0
  %59 = vmatpush1.bf16.msra.mxu0 0
  %60 = vmatprep.subr.bf16.mxu0 0
  %61 = vmatpush1.bf16.msra.mxu0 0
  %62 = vmatprep.subr.bf16.mxu0 0
  %63 = vmatpush1.bf16.msra.mxu0 0
  %64 = vmatprep.subr.bf16.mxu0 0
  %65 = vmatpush1.bf16.msra.mxu0 0
  %66 = vmatprep.subr.bf16.mxu0 0
  %67 = vmatpush1.bf16.msra.mxu0 0
  %68 = vmatprep.subr.bf16.mxu0 0
  %69 = vmatpush1.bf16.msra.mxu0 0
  %70 = vmatprep.subr.bf16.mxu0 0
  %71 = vmatpush1.bf16.msra.mxu0 0
  %72 = vmatprep.subr.bf16.mxu0 0
  %73 = vmatpush1.bf16.msra.mxu0 0
  %74 = vmatprep.subr.bf16.mxu0 0
  %75 = vmatpush1.bf16.msra.mxu0 0
  %76 = vmatprep.subr.bf16.mxu0 0
  %77 = vmatpush1.bf16.msra.mxu0 0
  %78 = vmatprep.subr.bf16.mxu0 0
  %79 = vmatpush1.bf16.msra.mxu0 0
  %80 = vmatprep.subr.bf16.mxu0 0
  %81 = vmatpush1.bf16.msra.mxu0 0
  %82 = vmatprep.subr.bf16.mxu0 0
  %83 = vmatpush1.bf16.msra.mxu0 0
  %84 = vmatprep.mubr.bf16.mxu0 0
  %85 = vmatmul.mubr.bf16.gmra.mrb[0].mxu0 %v50
  %v86 = vpop.f32.mrb[0].mxu0
  %v87 = vadd.f32 0.0, %v86
  %v88 = vpop.f32.mrb[0].mxu0
  %v89 = vpop.f32.mrb[0].mxu0
  %v90 = vadd.f32 0.0, %v89
  %v91 = vpop.f32.mrb[0].mxu0
  %92 = vdwg.mxu0
  %v93 = vld [vmem:[%s2] sm:$0xff]
  %v94 = vld [vmem:[%s2 + $0x8] sm:$0xff]
  %v95 = vadd.f32 %v93, %v87
  %v96 = vadd.f32 %v94, %v90
  %v97 = vmul.f32 %v95, 0.70710677
  %v98 = vmul.f32 %v96, 0.70710677
  %99 = vst.msk [vmem:[%s7] sm:$0xff] %vm48, %v97
  %100 = vst.msk [vmem:[%s7 + $0x8] sm:$0xff] %vm48, %v98
  %v101 = vsel %vm48, %v97, 0.0
  %102 = vadd.xlane.f32.xlu0 %v101
  %v103 = vpop.xlane.xlu0 %102
  %v104 = vsel %vm48, %v98, 0.0
  %105 = vadd.xlane.f32.xlu0 %v104
  %v106 = vpop.xlane.xlu0 %105
  %v107 = vrcp.pop 32.0
  %v108 = vmul.f32 %v103, %v107
  %v109 = vmul.f32 %v106, %v107
  %v110 = vsub.f32 %v97, %v108
  %v111 = vsub.f32 %v98, %v109
  %v112 = vmul.f32 %v110, %v110
  %v113 = vmul.f32 %v111, %v111
  %v114 = vsel %vm48, %v112, 0.0
  %115 = vadd.xlane.f32.xlu0 %v114
  %v116 = vpop.xlane.xlu0 %115
  %v117 = vsel %vm48, %v113, 0.0
  %118 = vadd.xlane.f32.xlu0 %v117
  %v119 = vpop.xlane.xlu0 %118
  %v120 = vmul.f32 %v116, %v107
  %v121 = vmul.f32 %v119, %v107
  %v122 = vadd.f32 %v120, 1e-05
  %v123 = vadd.f32 %v121, 1e-05
  %v124 = vrsqrt.pop %v122
  %v125 = vrsqrt.pop %v123
  %v126 = vmul.f32 %v110, %v124
  %v127 = vmul.f32 %v111, %v125
  %v128 = vld [vmem:[%s3] sm:$0x1]
  %v130 = vlaneseq
  %v131 = vshrl.u32 %v130, 7
  %v132 = vsub.s32 0, %v131
  %v133 = vrot.slane %v128, %v132
  %v135 = vmul.f32 %v126, %v133
  %v136 = vmul.f32 %v127, %v133
  %v137 = vld [vmem:[%s4] sm:$0x1]
  %v139 = vlaneseq
  %v140 = vshrl.u32 %v139, 7
  %v141 = vsub.s32 0, %v140
  %v142 = vrot.slane %v137, %v141
  %v144 = vadd.f32 %v135, %v142
  %v145 = vadd.f32 %v136, %v142
  %v146 = vpack.c.bf16 %v145, %v144
  %v147 = vld [vmem:[%s5] sm:$0xf]
  %v148 = vld [vmem:[%s5 + $0x4] sm:$0xf]
  %v149 = vld [vmem:[%s5 + $0x8] sm:$0xf]
  %v150 = vld [vmem:[%s5 + $0xc] sm:$0xf]
  %v151 = vld [vmem:[%s6] sm:$0x1]
  %v153 = vlaneseq
  %v154 = vshrl.u32 %v153, 7
  %v155 = vsub.s32 0, %v154
  %v156 = vrot.slane %v151, %v155
  %v162 = vunpack.c.l.b16 %v147
  %v163 = vunpack.c.l.b16 %v148
  %v164 = vunpack.c.l.b16 %v149
  %v165 = vunpack.c.l.b16 %v150
  %v166 = vpack.c.b16 %v163, %v162
  %v167 = vpack.c.b16 %v165, %v164
  %v171 = vsel %vm48, %v146, 0
  %173 = vmatprep.subr.bf16.mxu0 0
  %174 = vmatpush1.bf16.msra.mxu0 %v166
  %175 = vmatprep.subr.bf16.mxu0 0
  %176 = vmatpush1.bf16.msra.mxu0 %v167
  %177 = vmatprep.subr.bf16.mxu0 0
  %178 = vmatpush1.bf16.msra.mxu0 0
  %179 = vmatprep.subr.bf16.mxu0 0
  %180 = vmatpush1.bf16.msra.mxu0 0
  %181 = vmatprep.subr.bf16.mxu0 0
  %182 = vmatpush1.bf16.msra.mxu0 0
  %183 = vmatprep.subr.bf16.mxu0 0
  %184 = vmatpush1.bf16.msra.mxu0 0
  %185 = vmatprep.subr.bf16.mxu0 0
  %186 = vmatpush1.bf16.msra.mxu0 0
  %187 = vmatprep.subr.bf16.mxu0 0
  %188 = vmatpush1.bf16.msra.mxu0 0
  %189 = vmatprep.subr.bf16.mxu0 0
  %190 = vmatpush1.bf16.msra.mxu0 0
  %191 = vmatprep.subr.bf16.mxu0 0
  %192 = vmatpush1.bf16.msra.mxu0 0
  %193 = vmatprep.subr.bf16.mxu0 0
  %194 = vmatpush1.bf16.msra.mxu0 0
  %195 = vmatprep.subr.bf16.mxu0 0
  %196 = vmatpush1.bf16.msra.mxu0 0
  %197 = vmatprep.subr.bf16.mxu0 0
  %198 = vmatpush1.bf16.msra.mxu0 0
  %199 = vmatprep.subr.bf16.mxu0 0
  %200 = vmatpush1.bf16.msra.mxu0 0
  %201 = vmatprep.subr.bf16.mxu0 0
  %202 = vmatpush1.bf16.msra.mxu0 0
  %203 = vmatprep.subr.bf16.mxu0 0
  %204 = vmatpush1.bf16.msra.mxu0 0
  %205 = vmatprep.mubr.bf16.mxu0 0
  %206 = vmatmul.mubr.bf16.gmra.mrb[0].mxu0 %v171
  %v207 = vpop.f32.mrb[0].mxu0
  %v208 = vadd.f32 %v156, %v207
  %v209 = vpop.f32.mrb[0].mxu0
  %v210 = vpop.f32.mrb[0].mxu0
  %v211 = vadd.f32 %v156, %v210
  %v212 = vpop.f32.mrb[0].mxu0
  %213 = vdwg.mxu0
  %214 = vst.msk [vmem:[%s8] sm:$0xff] %vm48, %v208
  %215 = vst.msk [vmem:[%s8 + $0x8] sm:$0xff] %vm48, %v211
  // Predicated region
  $region30: #{transformer_glu_forward.6} parent=0 // pred_check
    _
  $region31: #{transformer_glu_forward.6} parent=0 // pred_check_branch
    %217 = sbr.rel (0) target = $region33
  $region32: #{transformer_glu_forward.6} parent=0 // pred_region
    _
  $region33: #{transformer_glu_forward.6} parent=0 // pred_fallthru
    _
  // Predicated region
  $region34: #{transformer_glu_forward.6} parent=0 // pred_check
    _
  $region35: #{transformer_glu_forward.6} parent=0 // pred_check_branch
    %219 = sbr.rel (0) target = $region37
  $region36: #{transformer_glu_forward.6} parent=0 // pred_region
    _
  $region37: #{transformer_glu_forward.6} parent=0 // pred_fallthru
    _
  // Predicated region
  $region38: #{transformer_glu_forward.6} parent=0 // pred_check
    _
  $region39: #{transformer_glu_forward.6} parent=0 // pred_check_branch
    %221 = sbr.rel (0) target = $region41
  $region40: #{transformer_glu_forward.6} parent=0 // pred_region
    _
  $region41: #{transformer_glu_forward.6} parent=0 // pred_fallthru
    _
  // Predicated region
  $region42: #{transformer_glu_forward.6} parent=0 // pred_check
    _
  $region43: #{transformer_glu_forward.6} parent=0 // pred_check_branch
    %223 = sbr.rel (0) target = $region45
  $region44: #{transformer_glu_forward.6} parent=0 // pred_region
    _
  $region45: #{transformer_glu_forward.6} parent=0 // pred_fallthru
    _

// kernel: transformer_glu_forward.7
$region0: #{transformer_glu_forward.7}
  #allocation0 [shape = 'u32[]', space=smem, size = 0x4, offset = 0x4, fixed_abs, tag = 'smem constant byte address 0x4 - core index']
  #allocation1 [shape = 'u32[144,128]{1,0:T(1,128)}', space=vmem, size = 0x12000, scoped, tag = 'internal scratch']
  %s0 = inlined_call_operand.vmem [shape: f32[2,8,32], index: 0, kind: input, shape index: {}]
  %s1 = inlined_call_operand.vmem [shape: bf16[3,32,64], index: 1, kind: input, shape index: {}]
  %s2 = inlined_call_operand.vmem [shape: f32[1,64], index: 2, kind: input, shape index: {}]
  %s3 = inlined_call_operand.vmem [shape: f32[2,8,32], index: 3, kind: input, shape index: {}]
  %s4 = inlined_call_operand.hbm [shape: f32[2,8,32], index: 4, kind: output, shape index: {}]
  %s5 = sld [smem:[#allocation0]]
  $region49: #{transformer_glu_forward.7} parent=0
    _
  %s7 = ssub.s32 1, %s5
  %s8 = scalar_select 0, %s7, %s5
  $region1: #{transformer_glu_forward.7} parent=0
    #allocation2 [shape = 'u8[8192]{0}', space=vmem, size = 0x2000, scoped, tag = 'output window, operand 0']
    #allocation3 [shape = 's32[2]{0}', space=sflag, size = 0x8, scoped, tag = 'scoped memory for transformer_glu_forward.7']
    %9 = vsyncpa [#allocation3], 0
    %s10 = scalar_lea.sflag [#allocation3], 1
    %11 = vsyncpa %s10, 0
    loop: start=0, step=1, limit=4
    $region2: #{transformer_glu_forward.7} parent=1 // loop_pre_header
      _
    $region3: #{transformer_glu_forward.7} parent=1 // loop_header
      %s13 = sphi 0, %s17
      %p14 = scmp.ge.s32.totalorder %s13, 4
      %s23 = sphi 0, %s25
      %s26 = sphi 0, %s23
      %s27 = sphi 0, %s26
      %s43 = sphi 0, %s27
      %s47 = sphi 0, %s47
      %s49 = sphi 0, %s47
      %s50 = sphi 0, %s49
      %s64 = sphi 0, %s50
      %s68 = sphi 0, %s68
      %s70 = sphi 0, %s68
      %s71 = sphi 0, %s70
      %s85 = sphi 0, %s71
      %s91 = sphi 0, %s93
      %s94 = sphi 0, %s91
      %s95 = sphi 0, %s94
      %s111 = sphi 0, %s95
      %s117 = sphi 0, %s119
      %s120 = sphi 0, %s117
      %s121 = sphi 0, %s120
      %s137 = sphi 0, %s121
    $region4: #{transformer_glu_forward.7} parent=1 // loop_header_branch
      %16 = sbr.rel (%p14) target = $region8
    $region5: #{transformer_glu_forward.7} parent=1 // loop_body
      %s18 = ssub.s32 %s13, 1
      %s19 = ssub.s32 %s13, 2
      %s20 = sadd.s32 %s13, 1
      %s21 = ssub.s32 %s13, %s20
      %p22 = scmp.eq.s32.totalorder %s21, 0
      %s24 = sadd.s32 %s23, 1
      %s25 = scalar_select %p22, %s23, %s24
      %p28 = pneg %p22
      %p29 = scmp.eq.s32.totalorder %s13, 1
      %p30 = por %p28, %p29
      %p31 = scmp.ne.s32.totalorder %s23, %s26
      %p32 = scmp.eq.s32.totalorder %s13, 0
      %p33 = por %p31, %p32
      %p34 = scmp.ne.s32.totalorder %s23, %s26
      %p35 = scmp.eq.s32.totalorder %s18, 1
      %p36 = por %p34, %p35
      %p37 = scmp.ne.s32.totalorder %s26, %s27
      %p38 = scmp.eq.s32.totalorder %s18, 0
      %p39 = por %p37, %p38
      %p40 = scmp.ne.s32.totalorder %s26, %s27
      %p41 = scmp.eq.s32.totalorder %s19, 1
      %p42 = por %p40, %p41
      %p44 = scmp.ne.s32.totalorder %s27, %s43
      %p45 = scmp.eq.s32.totalorder %s19, 0
      %p46 = por %p44, %p45
      %s48 = sadd.s32 %s47, 1
      %p51 = scmp.eq.s32.totalorder %s13, 1
      %p52 = scmp.ne.s32.totalorder %s47, %s49
      %p53 = scmp.eq.s32.totalorder %s13, 0
      %p54 = por %p52, %p53
      %p55 = scmp.ne.s32.totalorder %s47, %s49
      %p56 = scmp.eq.s32.totalorder %s18, 1
      %p57 = por %p55, %p56
      %p58 = scmp.ne.s32.totalorder %s49, %s50
      %p59 = scmp.eq.s32.totalorder %s18, 0
      %p60 = por %p58, %p59
      %p61 = scmp.ne.s32.totalorder %s49, %s50
      %p62 = scmp.eq.s32.totalorder %s19, 1
      %p63 = por %p61, %p62
      %p65 = scmp.ne.s32.totalorder %s50, %s64
      %p66 = scmp.eq.s32.totalorder %s19, 0
      %p67 = por %p65, %p66
      %s69 = sadd.s32 %s68, 1
      %p72 = scmp.eq.s32.totalorder %s13, 1
      %p73 = scmp.ne.s32.totalorder %s68, %s70
      %p74 = scmp.eq.s32.totalorder %s13, 0
      %p75 = por %p73, %p74
      %p76 = scmp.ne.s32.totalorder %s68, %s70
      %p77 = scmp.eq.s32.totalorder %s18, 1
      %p78 = por %p76, %p77
      %p79 = scmp.ne.s32.totalorder %s70, %s71
      %p80 = scmp.eq.s32.totalorder %s18, 0
      %p81 = por %p79, %p80
      %p82 = scmp.ne.s32.totalorder %s70, %s71
      %p83 = scmp.eq.s32.totalorder %s19, 1
      %p84 = por %p82, %p83
      %p86 = scmp.ne.s32.totalorder %s71, %s85
      %p87 = scmp.eq.s32.totalorder %s19, 0
      %p88 = por %p86, %p87
      %s89 = ssub.s32 %s13, %s20
      %p90 = scmp.eq.s32.totalorder %s89, 0
      %s92 = sadd.s32 %s91, 1
      %s93 = scalar_select %p90, %s91, %s92
      %p96 = pneg %p90
      %p97 = scmp.eq.s32.totalorder %s13, 1
      %p98 = por %p96, %p97
      %p99 = scmp.ne.s32.totalorder %s91, %s94
      %p100 = scmp.eq.s32.totalorder %s13, 0
      %p101 = por %p99, %p100
      %p102 = scmp.ne.s32.totalorder %s91, %s94
      %p103 = scmp.eq.s32.totalorder %s18, 1
      %p104 = por %p102, %p103
      %p105 = scmp.ne.s32.totalorder %s94, %s95
      %p106 = scmp.eq.s32.totalorder %s18, 0
      %p107 = por %p105, %p106
      %p108 = scmp.ne.s32.totalorder %s94, %s95
      %p109 = scmp.eq.s32.totalorder %s19, 1
      %p110 = por %p108, %p109
      %p112 = scmp.ne.s32.totalorder %s95, %s111
      %p113 = scmp.eq.s32.totalorder %s19, 0
      %p114 = por %p112, %p113
      %s115 = ssub.s32 %s13, %s20
      %p116 = scmp.eq.s32.totalorder %s115, 0
      %s118 = sadd.s32 %s117, 1
      %s119 = scalar_select %p116, %s117, %s118
      %p122 = pneg %p116
      %p123 = scmp.eq.s32.totalorder %s13, 1
      %p124 = por %p122, %p123
      %p125 = scmp.ne.s32.totalorder %s117, %s120
      %p126 = scmp.eq.s32.totalorder %s13, 0
      %p127 = por %p125, %p126
      %p128 = scmp.ne.s32.totalorder %s117, %s120
      %p129 = scmp.eq.s32.totalorder %s18, 1
      %p130 = por %p128, %p129
      %p131 = scmp.ne.s32.totalorder %s120, %s121
      %p132 = scmp.eq.s32.totalorder %s18, 0
      %p133 = por %p131, %p132
      %p134 = scmp.ne.s32.totalorder %s120, %s121
      %p135 = scmp.eq.s32.totalorder %s19, 1
      %p136 = por %p134, %p135
      %p138 = scmp.ne.s32.totalorder %s121, %s137
      %p139 = scmp.eq.s32.totalorder %s19, 0
      %p140 = por %p138, %p139
      %p141 = scmp.le.s32.totalorder 1, %s13
      %p142 = scmp.lt.s32.totalorder %s13, 3
      %p143 = pnand %p141, %p142
      %p144 = pneg %p143
      // Predicated region
      $region9: #{transformer_glu_forward.7} parent=5 // pred_check
        _
      $region10: #{transformer_glu_forward.7} parent=5 // pred_check_branch
        %146 = sbr.rel (%p143) target = $region12
      $region11: #{transformer_glu_forward.7} parent=5 // pred_region
        %s147 = ssub.s32 %s13, 1
        // Predicated region
        $region13: #{transformer_glu_forward.7} parent=11 // pred_check
          %p148 = pneg %p60
        $region14: #{transformer_glu_forward.7} parent=11 // pred_check_branch
          %150 = sbr.rel (%p148) target = $region16
        $region15: #{transformer_glu_forward.7} parent=11 // pred_region
          _
        $region16: #{transformer_glu_forward.7} parent=11 // pred_fallthru
          _
        // Predicated region
        $region17: #{transformer_glu_forward.7} parent=11 // pred_check
          %p151 = pneg %p81
        $region18: #{transformer_glu_forward.7} parent=11 // pred_check_branch
          %153 = sbr.rel (%p151) target = $region20
        $region19: #{transformer_glu_forward.7} parent=11 // pred_region
          _
        $region20: #{transformer_glu_forward.7} parent=11 // pred_fallthru
          _
      $region12: #{transformer_glu_forward.7} parent=5 // pred_fallthru
        _
      %p154 = scmp.lt.s32.totalorder %s13, 2
      // Predicated region
      $region21: #{transformer_glu_forward.7} parent=5 // pred_check
        %p155 = pneg %p154
      $region22: #{transformer_glu_forward.7} parent=5 // pred_check_branch
        %157 = sbr.rel (%p155) target = $region24
      $region23: #{transformer_glu_forward.7} parent=5 // pred_region
        // Predicated region
        $region25: #{transformer_glu_forward.7} parent=23 // pred_check
          %p158 = pneg %p33
        $region26: #{transformer_glu_forward.7} parent=23 // pred_check_branch
          %160 = sbr.rel (%p158) target = $region28
        $region27: #{transformer_glu_forward.7} parent=23 // pred_region
          %p161 = scmp.lt.s32.totalorder %s13, 1
          %s162 = scalar_select %p161, %s13, 1
          %s163 = smul.addr %s162, 8
          %s164 = scalar_lea.vmem %s0, %s163
        $region28: #{transformer_glu_forward.7} parent=23 // pred_fallthru
          _
        // Predicated region
        $region29: #{transformer_glu_forward.7} parent=23 // pred_check
          %p165 = pneg %p101
        $region30: #{transformer_glu_forward.7} parent=23 // pred_check_branch
          %167 = sbr.rel (%p165) target = $region32
        $region31: #{transformer_glu_forward.7} parent=23 // pred_region
          %p168 = scmp.lt.s32.totalorder %s13, 1
          %s169 = scalar_select %p168, %s13, 1
          %s170 = smul.addr %s169, 8
          %s171 = scalar_lea.vmem %s3, %s170
        $region32: #{transformer_glu_forward.7} parent=23 // pred_fallthru
          _
      $region24: #{transformer_glu_forward.7} parent=5 // pred_fallthru
        _
      %p172 = scmp.le.s32.totalorder 1, %s13
      %p173 = scmp.lt.s32.totalorder %s13, 3
      %p174 = pnand %p172, %p173
      %p175 = pneg %p174
      // Predicated region
      $region33: #{transformer_glu_forward.7} parent=5 // pred_check
        _
      $region34: #{transformer_glu_forward.7} parent=5 // pred_check_branch
        %177 = sbr.rel (%p174) target = $region36
      $region35: #{transformer_glu_forward.7} parent=5 // pred_region
        %s178 = ssub.s32 %s13, 1
        %p179 = scmp.lt.s32.totalorder %s18, 1
        %s180 = scalar_select %p179, %s18, 1
        %s181 = smul.addr %s180, 8
        %s182 = scalar_lea.vmem %s0, %s181
        %p183 = pneg %p39
        %p184 = pneg %p36
        %p185 = pneg %p60
        %p186 = pneg %p57
        %p187 = pneg %p81
        %p188 = pneg %p78
        %p189 = scmp.lt.s32.totalorder %s18, 1
        %s190 = scalar_select %p189, %s18, 1
        %s191 = smul.addr %s190, 8
        %s192 = scalar_lea.vmem %s3, %s191
        %p193 = pneg %p107
        %p194 = pneg %p104
        %p195 = pneg %p133
        %p196 = pneg %p130
        %s197 = sand.u32 %s120, 1
        %s198 = scalar_lea.sflag [#allocation3], %s197
        %s199 = sand.u32 %s120, 1
        %s200 = smul.addr %s199, 8
        %s201 = scalar_lea.vmem [#allocation2], %s200
        %p202 = scmp.lt.s32.totalorder %s18, 1
        %s203 = scalar_select %p202, %s18, 1
        %s204 = smul.addr %s203, 8
        %s205 = scalar_lea.vmem %s0, %s204
        %p206 = scmp.lt.s32.totalorder %s18, 1
        %s207 = scalar_select %p206, %s18, 1
        %s208 = smul.addr %s207, 8
        %s209 = scalar_lea.vmem %s3, %s208
        %v211 = vld [vmem:[%s205] sm:$0xff]
        %v212 = vld [vmem:[%s2] sm:$0x1]
        %v214 = vlaneseq
        %v215 = vshrl.u32 %v214, 7
        %v216 = vsub.s32 0, %v215
        %v217 = vrot.slane %v212, %v216
        %v219 = vadd.f32 %v217, 0.0
        %v220 = vlaneseq
        %v221 = vshrl.u32 %v220, 7
        %v222 = vrot.slane %v211, 7
        %v223 = vadd.s32 %v221, 4294967295
        %vm224 = vcmp.ge.s32.totalorder %v223, 0
        %vm225 = vcmp.lt.s32.totalorder %v223, 8
        %vm226 = vmand %vm224, %vm225
        %v227 = vsel %vm226, %v222, 0.0
        %v228 = vpack.c.bf16 %v227, %v227
        %v229 = vld [vmem:[%s1] sm:$0xf]
        %v230 = vld [vmem:[%s1 + $0x4] sm:$0xf]
        %v231 = vld [vmem:[%s1 + $0x8] sm:$0xf]
        %v232 = vld [vmem:[%s1 + $0xc] sm:$0xf]
        %v237 = vunpack.c.l.b16 %v229
        %v238 = vunpack.c.l.b16 %v230
        %v239 = vunpack.c.l.b16 %v231
        %v240 = vunpack.c.l.b16 %v232
        %v241 = vpack.c.b16 %v238, %v237
        %v242 = vpack.c.b16 %v240, %v239
        %vm245 = vcmask 261120
        %v247 = vsel %vm245, %v228, 0
        %249 = vmatprep.subr.bf16.mxu0 0
        %250 = vmatpush1.bf16.msra.mxu0 %v241
        %251 = vmatprep.subr.bf16.mxu0 0
        %252 = vmatpush1.bf16.msra.mxu0 %v242
        %253 = vmatprep.subr.bf16.mxu0 0
        %254 = vmatpush1.bf16.msra.mxu0 0
        %255 = vmatprep.subr.bf16.mxu0 0
        %256 = vmatpush1.bf16.msra.mxu0 0
        %257 = vmatprep.subr.bf16.mxu0 0
        %258 = vmatpush1.bf16.msra.mxu0 0
        %259 = vmatprep.subr.bf16.mxu0 0
        %260 = vmatpush1.bf16.msra.mxu0 0
        %261 = vmatprep.subr.bf16.mxu0 0
        %262 = vmatpush1.bf16.msra.mxu0 0
        %263 = vmatprep.subr.bf16.mxu0 0
        %264 = vmatpush1.bf16.msra.mxu0 0
        %265 = vmatprep.subr.bf16.mxu0 0
        %266 = vmatpush1.bf16.msra.mxu0 0
        %267 = vmatprep.subr.bf16.mxu0 0
        %268 = vmatpush1.bf16.msra.mxu0 0
        %269 = vmatprep.subr.bf16.mxu0 0
        %270 = vmatpush1.bf16.msra.mxu0 0
        %271 = vmatprep.subr.bf16.mxu0 0
        %272 = vmatpush1.bf16.msra.mxu0 0
        %273 = vmatprep.subr.bf16.mxu0 0
        %274 = vmatpush1.bf16.msra.mxu0 0
        %275 = vmatprep.subr.bf16.mxu0 0
        %276 = vmatpush1.bf16.msra.mxu0 0
        %277 = vmatprep.subr.bf16.mxu0 0
        %278 = vmatpush1.bf16.msra.mxu0 0
        %279 = vmatprep.subr.bf16.mxu0 0
        %280 = vmatpush1.bf16.msra.mxu0 0
        %281 = vmatprep.mubr.bf16.mxu0 0
        %282 = vmatmul.mubr.bf16.gmra.mrb[0].mxu0 %v247
        %v283 = vpop.f32.mrb[0].mxu0
        %v284 = vadd.f32 0.0, %v283
        %v285 = vpop.f32.mrb[0].mxu0
        %v286 = vpop.f32.mrb[0].mxu0
        %v287 = vpop.f32.mrb[0].mxu0
        %288 = vdwg.mxu0
        %v289 = vadd.f32 %v219, %v284
        %v290 = vpack.c.bf16 %v211, %v211
        %s291 = scalar_lea.vmem %s1, 16
        %v292 = vld [vmem:[%s291] sm:$0xf]
        %v293 = vld [vmem:[%s291 + $0x4] sm:$0xf]
        %v294 = vld [vmem:[%s291 + $0x8] sm:$0xf]
        %v295 = vld [vmem:[%s291 + $0xc] sm:$0xf]
        %v300 = vunpack.c.l.b16 %v292
        %v301 = vunpack.c.l.b16 %v293
        %v302 = vunpack.c.l.b16 %v294
        %v303 = vunpack.c.l.b16 %v295
        %v304 = vpack.c.b16 %v301, %v300
        %v305 = vpack.c.b16 %v303, %v302
        %v309 = vsel %vm245, %v290, 0
        %311 = vmatprep.subr.bf16.mxu0 0
        %312 = vmatpush1.bf16.msra.mxu0 %v304
        %313 = vmatprep.subr.bf16.mxu0 0
        %314 = vmatpush1.bf16.msra.mxu0 %v305
        %315 = vmatprep.subr.bf16.mxu0 0
        %316 = vmatpush1.bf16.msra.mxu0 0
        %317 = vmatprep.subr.bf16.mxu0 0
        %318 = vmatpush1.bf16.msra.mxu0 0
        %319 = vmatprep.subr.bf16.mxu0 0
        %320 = vmatpush1.bf16.msra.mxu0 0
        %321 = vmatprep.subr.bf16.mxu0 0
        %322 = vmatpush1.bf16.msra.mxu0 0
        %323 = vmatprep.subr.bf16.mxu0 0
        %324 = vmatpush1.bf16.msra.mxu0 0
        %325 = vmatprep.subr.bf16.mxu0 0
        %326 = vmatpush1.bf16.msra.mxu0 0
        %327 = vmatprep.subr.bf16.mxu0 0
        %328 = vmatpush1.bf16.msra.mxu0 0
        %329 = vmatprep.subr.bf16.mxu0 0
        %330 = vmatpush1.bf16.msra.mxu0 0
        %331 = vmatprep.subr.bf16.mxu0 0
        %332 = vmatpush1.bf16.msra.mxu0 0
        %333 = vmatprep.subr.bf16.mxu0 0
        %334 = vmatpush1.bf16.msra.mxu0 0
        %335 = vmatprep.subr.bf16.mxu0 0
        %336 = vmatpush1.bf16.msra.mxu0 0
        %337 = vmatprep.subr.bf16.mxu0 0
        %338 = vmatpush1.bf16.msra.mxu0 0
        %339 = vmatprep.subr.bf16.mxu0 0
        %340 = vmatpush1.bf16.msra.mxu0 0
        %341 = vmatprep.subr.bf16.mxu0 0
        %342 = vmatpush1.bf16.msra.mxu0 0
        %343 = vmatprep.mubr.bf16.mxu0 0
        %344 = vmatmul.mubr.bf16.gmra.mrb[0].mxu0 %v309
        %v345 = vpop.f32.mrb[0].mxu0
        %v346 = vadd.f32 0.0, %v345
        %v347 = vpop.f32.mrb[0].mxu0
        %v348 = vpop.f32.mrb[0].mxu0
        %v349 = vpop.f32.mrb[0].mxu0
        %350 = vdwg.mxu0
        %v351 = vadd.f32 %v289, %v346
        %v352 = vrot.slane %v211, 1
        %v353 = vadd.s32 %v221, 1
        %vm354 = vcmp.ge.s32.totalorder %v353, 0
        %vm355 = vcmp.lt.s32.totalorder %v353, 8
        %vm356 = vmand %vm354, %vm355
        %v357 = vsel %vm356, %v352, 0.0
        %v358 = vpack.c.bf16 %v357, %v357
        %s359 = scalar_lea.vmem %s1, 32
        %v360 = vld [vmem:[%s359] sm:$0xf]
        %v361 = vld [vmem:[%s359 + $0x4] sm:$0xf]
        %v362 = vld [vmem:[%s359 + $0x8] sm:$0xf]
        %v363 = vld [vmem:[%s359 + $0xc] sm:$0xf]
        %v368 = vunpack.c.l.b16 %v360
        %v369 = vunpack.c.l.b16 %v361
        %v370 = vunpack.c.l.b16 %v362
        %v371 = vunpack.c.l.b16 %v363
        %v372 = vpack.c.b16 %v369, %v368
        %v373 = vpack.c.b16 %v371, %v370
        %v377 = vsel %vm245, %v358, 0
        %379 = vmatprep.subr.bf16.mxu0 0
        %380 = vmatpush1.bf16.msra.mxu0 %v372
        %381 = vmatprep.subr.bf16.mxu0 0
        %382 = vmatpush1.bf16.msra.mxu0 %v373
        %383 = vmatprep.subr.bf16.mxu0 0
        %384 = vmatpush1.bf16.msra.mxu0 0
        %385 = vmatprep.subr.bf16.mxu0 0
        %386 = vmatpush1.bf16.msra.mxu0 0
        %387 = vmatprep.subr.bf16.mxu0 0
        %388 = vmatpush1.bf16.msra.mxu0 0
        %389 = vmatprep.subr.bf16.mxu0 0
        %390 = vmatpush1.bf16.msra.mxu0 0
        %391 = vmatprep.subr.bf16.mxu0 0
        %392 = vmatpush1.bf16.msra.mxu0 0
        %393 = vmatprep.subr.bf16.mxu0 0
        %394 = vmatpush1.bf16.msra.mxu0 0
        %395 = vmatprep.subr.bf16.mxu0 0
        %396 = vmatpush1.bf16.msra.mxu0 0
        %397 = vmatprep.subr.bf16.mxu0 0
        %398 = vmatpush1.bf16.msra.mxu0 0
        %399 = vmatprep.subr.bf16.mxu0 0
        %400 = vmatpush1.bf16.msra.mxu0 0
        %401 = vmatprep.subr.bf16.mxu0 0
        %402 = vmatpush1.bf16.msra.mxu0 0
        %403 = vmatprep.subr.bf16.mxu0 0
        %404 = vmatpush1.bf16.msra.mxu0 0
        %405 = vmatprep.subr.bf16.mxu0 0
        %406 = vmatpush1.bf16.msra.mxu0 0
        %407 = vmatprep.subr.bf16.mxu0 0
        %408 = vmatpush1.bf16.msra.mxu0 0
        %409 = vmatprep.subr.bf16.mxu0 0
        %410 = vmatpush1.bf16.msra.mxu0 0
        %411 = vmatprep.mubr.bf16.mxu0 0
        %412 = vmatmul.mubr.bf16.gmra.mrb[0].mxu0 %v377
        %v413 = vpop.f32.mrb[0].mxu0
        %v414 = vadd.f32 0.0, %v413
        %v415 = vpop.f32.mrb[0].mxu0
        %v416 = vpop.f32.mrb[0].mxu0
        %v417 = vpop.f32.mrb[0].mxu0
        %418 = vdwg.mxu0
        %v419 = vadd.f32 %v351, %v414
        %v420 = vxor.u32 %v419, 2147483648
        %v421 = vmul.f32 %v420, 1.442695
        %v422 = vpow.pop %v421
        %v423 = vadd.f32 %v422, 1.0
        %v424 = vrcp.pop %v423
        %v425 = vmul.f32 1.0, %v424
        %427 = vrot.lane.b32.xlu0 %v425, 96
        %v428 = vpop.permute.xlu0 %427
        %v430 = vmul.f32 %v419, %v428
        %v431 = vadd.f32 %v211, %v430
        %v432 = vmul.f32 %v431, 0.70710677
        %v433 = vld [vmem:[%s209] sm:$0xff]
        %v434 = vadd.f32 %v433, %v432
        %v435 = vmul.f32 %v434, 0.70710677
        %436 = vst.msk [vmem:[%s201] sm:$0xff] %vm245, %v435
        %s437 = sand.u32 %s120, 1
        %s438 = scalar_lea.sflag [#allocation3], %s437
        %s439 = sand.u32 %s120, 1
        %s440 = smul.addr %s439, 8
        %s441 = scalar_lea.vmem [#allocation2], %s440
        // Predicated region
        $region37: #{transformer_glu_forward.7} parent=35 // pred_check
          %p442 = pneg %p130
        $region38: #{transformer_glu_forward.7} parent=35 // pred_check_branch
          %444 = sbr.rel (%p442) target = $region40
        $region39: #{transformer_glu_forward.7} parent=35 // pred_region
          %s446 = ssub.s32 128, 128
          %447 = vsyncadd %s438, %s446
          %s448 = smul.addr %s18, 128
          %s449 = scalar_lea.hbm %s4, %s448
          %s451 = sshll.u32 %s441, 4
          %s452 = int_to_ptr.vmem [resolvable:$true] %s451
          %454 = dma.vmem_to_hbm [thread:$0]  %s452, 128, %s449, %s438
        $region40: #{transformer_glu_forward.7} parent=35 // pred_fallthru
          _
      $region36: #{transformer_glu_forward.7} parent=5 // pred_fallthru
        _
      %p455 = scmp.le.s32.totalorder 2, %s13
      // Predicated region
      $region41: #{transformer_glu_forward.7} parent=5 // pred_check
        %p456 = pneg %p455
      $region42: #{transformer_glu_forward.7} parent=5 // pred_check_branch
        %458 = sbr.rel (%p456) target = $region44
      $region43: #{transformer_glu_forward.7} parent=5 // pred_region
        %s459 = ssub.s32 %s13, 2
        // Predicated region
        $region45: #{transformer_glu_forward.7} parent=43 // pred_check
          %p460 = pneg %p136
        $region46: #{transformer_glu_forward.7} parent=43 // pred_check_branch
          %462 = sbr.rel (%p460) target = $region48
        $region47: #{transformer_glu_forward.7} parent=43 // pred_region
          %s463 = sand.u32 %s121, 1
          %s464 = scalar_lea.sflag [#allocation3], %s463
          %s465 = sand.u32 %s121, 1
          %s466 = smul.addr %s465, 8
          %s467 = scalar_lea.vmem [#allocation2], %s466
          %468 = dma.done %s464, 128
        $region48: #{transformer_glu_forward.7} parent=43 // pred_fallthru
          _
      $region44: #{transformer_glu_forward.7} parent=5 // pred_fallthru
        _
    $region6: #{transformer_glu_forward.7} parent=1 // loop_footer
      %s17 = sadd.s32 1, %s13
    $region7: #{transformer_glu_forward.7} parent=1 // loop_footer_branch
      %12 = sbr.rel target = $region3
    $region8: #{transformer_glu_forward.7} parent=1 // loop_exit
      _
    %469 = vsyncpa [#allocation3], 1
    %s470 = scalar_lea.sflag [#allocation3], 1
    %471 = vsyncpa %s470, 1

// kernel: transformer_glu_forward.5
$region0: #{transformer_glu_forward.5}
  #allocation0 [shape = 'u32[]', space=smem, size = 0x4, offset = 0x4, fixed_abs, tag = 'smem constant byte address 0x4 - core index']
  #allocation1 [shape = 'u32[144,128]{1,0:T(1,128)}', space=vmem, size = 0x12000, scoped, tag = 'internal scratch']
  %s0 = inlined_call_operand.vmem [shape: f32[2,8,96], index: 0, kind: input, shape index: {}]
  %s1 = inlined_call_operand.vmem [shape: f32[2,8,32], index: 1, kind: output, shape index: {0}]
  %s2 = inlined_call_operand.hbm [shape: f32[2,4,8,8], index: 2, kind: output, shape index: {1}]
  %3 = xla_tuple %s1, %s2
  %s4 = sld [smem:[#allocation0]]
  $region45: #{transformer_glu_forward.5} parent=0
    _
  %s6 = ssub.s32 1, %s4
  %s7 = scalar_select 0, %s6, %s4
  $region1: #{transformer_glu_forward.5} parent=0
    #allocation2 [shape = 'u8[32768]{0}', space=vmem, size = 0x8000, scoped, tag = 'output window, operand 1']
    #allocation3 [shape = 's32[2]{0}', space=sflag, size = 0x8, scoped, tag = 'scoped memory for transformer_glu_forward.5']
    %8 = vsyncpa [#allocation3], 0
    %s9 = scalar_lea.sflag [#allocation3], 1
    %10 = vsyncpa %s9, 0
    loop: start=0, step=1, limit=4
    $region2: #{transformer_glu_forward.5} parent=1 // loop_pre_header
      _
    $region3: #{transformer_glu_forward.5} parent=1 // loop_header
      %s12 = sphi 0, %s16
      %p13 = scmp.ge.s32.totalorder %s12, 4
      %s22 = sphi 0, %s24
      %s25 = sphi 0, %s22
      %s26 = sphi 0, %s25
      %s42 = sphi 0, %s26
      %s48 = sphi 0, %s50
      %s51 = sphi 0, %s48
      %s52 = sphi 0, %s51
      %s68 = sphi 0, %s52
      %s74 = sphi 0, %s76
      %s77 = sphi 0, %s74
      %s78 = sphi 0, %s77
      %s94 = sphi 0, %s78
    $region4: #{transformer_glu_forward.5} parent=1 // loop_header_branch
      %15 = sbr.rel (%p13) target = $region8
    $region5: #{transformer_glu_forward.5} parent=1 // loop_body
      %s17 = ssub.s32 %s12, 1
      %s18 = ssub.s32 %s12, 2
      %s19 = sadd.s32 %s12, 1
      %s20 = ssub.s32 %s12, %s19
      %p21 = scmp.eq.s32.totalorder %s20, 0
      %s23 = sadd.s32 %s22, 1
      %s24 = scalar_select %p21, %s22, %s23
      %p27 = pneg %p21
      %p28 = scmp.eq.s32.totalorder %s12, 1
      %p29 = por %p27, %p28
      %p30 = scmp.ne.s32.totalorder %s22, %s25
      %p31 = scmp.eq.s32.totalorder %s12, 0
      %p32 = por %p30, %p31
      %p33 = scmp.ne.s32.totalorder %s22, %s25
      %p34 = scmp.eq.s32.totalorder %s17, 1
      %p35 = por %p33, %p34
      %p36 = scmp.ne.s32.totalorder %s25, %s26
      %p37 = scmp.eq.s32.totalorder %s17, 0
      %p38 = por %p36, %p37
      %p39 = scmp.ne.s32.totalorder %s25, %s26
      %p40 = scmp.eq.s32.totalorder %s18, 1
      %p41 = por %p39, %p40
      %p43 = scmp.ne.s32.totalorder %s26, %s42
      %p44 = scmp.eq.s32.totalorder %s18, 0
      %p45 = por %p43, %p44
      %s46 = ssub.s32 %s12, %s19
      %p47 = scmp.eq.s32.totalorder %s46, 0
      %s49 = sadd.s32 %s48, 1
      %s50 = scalar_select %p47, %s48, %s49
      %p53 = pneg %p47
      %p54 = scmp.eq.s32.totalorder %s12, 1
      %p55 = por %p53, %p54
      %p56 = scmp.ne.s32.totalorder %s48, %s51
      %p57 = scmp.eq.s32.totalorder %s12, 0
      %p58 = por %p56, %p57
      %p59 = scmp.ne.s32.totalorder %s48, %s51
      %p60 = scmp.eq.s32.totalorder %s17, 1
      %p61 = por %p59, %p60
      %p62 = scmp.ne.s32.totalorder %s51, %s52
      %p63 = scmp.eq.s32.totalorder %s17, 0
      %p64 = por %p62, %p63
      %p65 = scmp.ne.s32.totalorder %s51, %s52
      %p66 = scmp.eq.s32.totalorder %s18, 1
      %p67 = por %p65, %p66
      %p69 = scmp.ne.s32.totalorder %s52, %s68
      %p70 = scmp.eq.s32.totalorder %s18, 0
      %p71 = por %p69, %p70
      %s72 = ssub.s32 %s12, %s19
      %p73 = scmp.eq.s32.totalorder %s72, 0
      %s75 = sadd.s32 %s74, 1
      %s76 = scalar_select %p73, %s74, %s75
      %p79 = pneg %p73
      %p80 = scmp.eq.s32.totalorder %s12, 1
      %p81 = por %p79, %p80
      %p82 = scmp.ne.s32.totalorder %s74, %s77
      %p83 = scmp.eq.s32.totalorder %s12, 0
      %p84 = por %p82, %p83
      %p85 = scmp.ne.s32.totalorder %s74, %s77
      %p86 = scmp.eq.s32.totalorder %s17, 1
      %p87 = por %p85, %p86
      %p88 = scmp.ne.s32.totalorder %s77, %s78
      %p89 = scmp.eq.s32.totalorder %s17, 0
      %p90 = por %p88, %p89
      %p91 = scmp.ne.s32.totalorder %s77, %s78
      %p92 = scmp.eq.s32.totalorder %s18, 1
      %p93 = por %p91, %p92
      %p95 = scmp.ne.s32.totalorder %s78, %s94
      %p96 = scmp.eq.s32.totalorder %s18, 0
      %p97 = por %p95, %p96
      %p98 = scmp.le.s32.totalorder 1, %s12
      %p99 = scmp.lt.s32.totalorder %s12, 3
      %p100 = pnand %p98, %p99
      %p101 = pneg %p100
      // Predicated region
      $region9: #{transformer_glu_forward.5} parent=5 // pred_check
        _
      $region10: #{transformer_glu_forward.5} parent=5 // pred_check_branch
        %103 = sbr.rel (%p100) target = $region12
      $region11: #{transformer_glu_forward.5} parent=5 // pred_region
        %s104 = ssub.s32 %s12, 1
      $region12: #{transformer_glu_forward.5} parent=5 // pred_fallthru
        _
      %p105 = scmp.lt.s32.totalorder %s12, 2
      // Predicated region
      $region13: #{transformer_glu_forward.5} parent=5 // pred_check
        %p106 = pneg %p105
      $region14: #{transformer_glu_forward.5} parent=5 // pred_check_branch
        %108 = sbr.rel (%p106) target = $region16
      $region15: #{transformer_glu_forward.5} parent=5 // pred_region
        // Predicated region
        $region17: #{transformer_glu_forward.5} parent=15 // pred_check
          %p109 = pneg %p32
        $region18: #{transformer_glu_forward.5} parent=15 // pred_check_branch
          %111 = sbr.rel (%p109) target = $region20
        $region19: #{transformer_glu_forward.5} parent=15 // pred_region
          %p112 = scmp.lt.s32.totalorder %s12, 1
          %s113 = scalar_select %p112, %s12, 1
          %s114 = smul.addr %s113, 8
          %s115 = scalar_lea.vmem %s0, %s114
        $region20: #{transformer_glu_forward.5} parent=15 // pred_fallthru
          _
      $region16: #{transformer_glu_forward.5} parent=5 // pred_fallthru
        _
      %p116 = scmp.le.s32.totalorder 1, %s12
      %p117 = scmp.lt.s32.totalorder %s12, 3
      %p118 = pnand %p116, %p117
      %p119 = pneg %p118
      // Predicated region
      $region21: #{transformer_glu_forward.5} parent=5 // pred_check
        _
      $region22: #{transformer_glu_forward.5} parent=5 // pred_check_branch
        %121 = sbr.rel (%p118) target = $region24
      $region23: #{transformer_glu_forward.5} parent=5 // pred_region
        %s122 = ssub.s32 %s12, 1
        %p123 = scmp.lt.s32.totalorder %s17, 1
        %s124 = scalar_select %p123, %s17, 1
        %s125 = smul.addr %s124, 8
        %s126 = scalar_lea.vmem %s0, %s125
        %p127 = pneg %p38
        %p128 = pneg %p35
        %p129 = pneg %p64
        %p130 = pneg %p61
        %p131 = scmp.lt.s32.totalorder %s17, 1
        %s132 = scalar_select %p131, %s17, 1
        %s133 = smul.addr %s132, 8
        %s134 = scalar_lea.vmem %s1, %s133
        %p135 = pneg %p90
        %p136 = pneg %p87
        %s137 = sand.u32 %s77, 1
        %s138 = scalar_lea.sflag [#allocation3], %s137
        %s139 = sand.u32 %s77, 1
        %s140 = smul.addr %s139, 32
        %s141 = scalar_lea.vmem [#allocation2], %s140
        %p142 = scmp.lt.s32.totalorder %s17, 1
        %s143 = scalar_select %p142, %s17, 1
        %s144 = smul.addr %s143, 8
        %s145 = scalar_lea.vmem %s0, %s144
        %p146 = scmp.lt.s32.totalorder %s17, 1
        %s147 = scalar_select %p146, %s17, 1
        %s148 = smul.addr %s147, 8
        %s149 = scalar_lea.vmem %s1, %s148
        %v151 = vld [vmem:[%s145] sm:$0xff]
        %v152 = vpack.c.bf16 %v151, %v151
        %154 = vrot.lane.b32.xlu0 %v152, 96
        %v155 = vpop.permute.xlu0 %154
        %vm156 = vcmask 64512
        %v158 = vsel %vm156, %v152, 0
        %v161 = vsel %vm156, %v155, 0
        %163 = vmatprep.subr.bf16.mxu0 0
        %164 = vmatpush1.bf16.xpose.msra.mxu0 %v161
        %165 = vmatprep.subr.bf16.mxu0 0
        %166 = vmatpush1.bf16.xpose.msra.mxu0 0
        %167 = vmatprep.subr.bf16.mxu0 0
        %168 = vmatpush1.bf16.xpose.msra.mxu0 0
        %169 = vmatprep.subr.bf16.mxu0 0
        %170 = vmatpush1.bf16.xpose.msra.mxu0 0
        %171 = vmatprep.subr.bf16.mxu0 0
        %172 = vmatpush1.bf16.xpose.msra.mxu0 0
        %173 = vmatprep.subr.bf16.mxu0 0
        %174 = vmatpush1.bf16.xpose.msra.mxu0 0
        %175 = vmatprep.subr.bf16.mxu0 0
        %176 = vmatpush1.bf16.xpose.msra.mxu0 0
        %177 = vmatprep.subr.bf16.mxu0 0
        %178 = vmatpush1.bf16.xpose.msra.mxu0 0
        %179 = vmatprep.subr.bf16.mxu0 0
        %180 = vmatpush1.bf16.xpose.msra.mxu0 0
        %181 = vmatprep.subr.bf16.mxu0 0
        %182 = vmatpush1.bf16.xpose.msra.mxu0 0
        %183 = vmatprep.subr.bf16.mxu0 0
        %184 = vmatpush1.bf16.xpose.msra.mxu0 0
        %185 = vmatprep.subr.bf16.mxu0 0
        %186 = vmatpush1.bf16.xpose.msra.mxu0 0
        %187 = vmatprep.subr.bf16.mxu0 0
        %188 = vmatpush1.bf16.xpose.msra.mxu0 0
        %189 = vmatprep.subr.bf16.mxu0 0
        %190 = vmatpush1.bf16.xpose.msra.mxu0 0
        %191 = vmatprep.subr.bf16.mxu0 0
        %192 = vmatpush1.bf16.xpose.msra.mxu0 0
        %193 = vmatprep.subr.bf16.mxu0 0
        %194 = vmatpush1.bf16.xpose.msra.mxu0 0
        %195 = vmatprep.mubr.bf16.mxu0 0
        %196 = vmatmul.mubr.bf16.gmra.mrb[0].mxu0 %v158
        %v197 = vpop.f32.mrb[0].mxu0
        %v198 = vadd.f32 0.0, %v197
        %v199 = vpop.f32.mrb[0].mxu0
        %v200 = vpop.f32.mrb[0].mxu0
        %v201 = vpop.f32.mrb[0].mxu0
        %202 = vdwg.mxu0
        %v203 = vmul.f32 %v198, 0.35355338
        %v204 = vsel %vm156, %v203, -inf
        %205 = vmax.xlane.f32.xlu0 %v204
        %v206 = vpop.xlane.xlu0 %205
        %v207 = vsub.f32 %v203, %v206
        %v208 = vmul.f32 %v207, 1.442695
        %v209 = vpow.pop %v208
        %v210 = vsel %vm156, %v209, 0.0
        %211 = vadd.xlane.f32.xlu0 %v210
        %v212 = vpop.xlane.xlu0 %211
        %v213 = vrcp.pop %v212
        %v214 = vmul.f32 %v209, %v213
        %215 = vst.msk [vmem:[%s141] sm:$0xff] %vm156, %v214
        %v216 = vpack.c.bf16 %v214, %v214
        %217 = vrot.lane.b32.xlu0 %v152, 64
        %v218 = vpop.permute.xlu0 %217
        %v220 = vsel %vm156, %v216, 0
        %vm222 = vcmask 1043456
        %v224 = vsel %vm222, %v218, 0
        %226 = vmatprep.subr.bf16.mxu0 0
        %227 = vmatpush1.bf16.msra.mxu0 %v224
        %228 = vmatprep.subr.bf16.mxu0 0
        %229 = vmatpush1.bf16.msra.mxu0 0
        %230 = vmatprep.subr.bf16.mxu0 0
        %231 = vmatpush1.bf16.msra.mxu0 0
        %232 = vmatprep.subr.bf16.mxu0 0
        %233 = vmatpush1.bf16.msra.mxu0 0
        %234 = vmatprep.subr.bf16.mxu0 0
        %235 = vmatpush1.bf16.msra.mxu0 0
        %236 = vmatprep.subr.bf16.mxu0 0
        %237 = vmatpush1.bf16.msra.mxu0 0
        %238 = vmatprep.subr.bf16.mxu0 0
        %239 = vmatpush1.bf16.msra.mxu0 0
        %240 = vmatprep.subr.bf16.mxu0 0
        %241 = vmatpush1.bf16.msra.mxu0 0
        %242 = vmatprep.subr.bf16.mxu0 0
        %243 = vmatpush1.bf16.msra.mxu0 0
        %244 = vmatprep.subr.bf16.mxu0 0
        %245 = vmatpush1.bf16.msra.mxu0 0
        %246 = vmatprep.subr.bf16.mxu0 0
        %247 = vmatpush1.bf16.msra.mxu0 0
        %248 = vmatprep.subr.bf16.mxu0 0
        %249 = vmatpush1.bf16.msra.mxu0 0
        %250 = vmatprep.subr.bf16.mxu0 0
        %251 = vmatpush1.bf16.msra.mxu0 0
        %252 = vmatprep.subr.bf16.mxu0 0
        %253 = vmatpush1.bf16.msra.mxu0 0
        %254 = vmatprep.subr.bf16.mxu0 0
        %255 = vmatpush1.bf16.msra.mxu0 0
        %256 = vmatprep.subr.bf16.mxu0 0
        %257 = vmatpush1.bf16.msra.mxu0 0
        %258 = vmatprep.mubr.bf16.mxu0 0
        %259 = vmatmul.mubr.bf16.gmra.mrb[0].mxu0 %v220
        %v260 = vpop.f32.mrb[0].mxu0
        %v261 = vadd.f32 0.0, %v260
        %v262 = vpop.f32.mrb[0].mxu0
        %v263 = vpop.f32.mrb[0].mxu0
        %v264 = vpop.f32.mrb[0].mxu0
        %265 = vdwg.mxu0
        %266 = vst.msk [vmem:[%s149] sm:$0xff] %vm156, %v261
        %267 = vrot.lane.b32.xlu0 %v152, 120
        %v268 = vpop.permute.xlu0 %267
        %269 = vrot.lane.b32.xlu0 %v152, 88
        %v270 = vpop.permute.xlu0 %269
        %v272 = vsel %vm156, %v268, 0
        %v275 = vsel %vm156, %v270, 0
        %277 = vmatprep.subr.bf16.mxu0 0
        %278 = vmatpush1.bf16.xpose.msra.mxu0 %v275
        %279 = vmatprep.subr.bf16.mxu0 0
        %280 = vmatpush1.bf16.xpose.msra.mxu0 0
        %281 = vmatprep.subr.bf16.mxu0 0
        %282 = vmatpush1.bf16.xpose.msra.mxu0 0
        %283 = vmatprep.subr.bf16.mxu0 0
        %284 = vmatpush1.bf16.xpose.msra.mxu0 0
        %285 = vmatprep.subr.bf16.mxu0 0
        %286 = vmatpush1.bf16.xpose.msra.mxu0 0
        %287 = vmatprep.subr.bf16.mxu0 0
        %288 = vmatpush1.bf16.xpose.msra.mxu0 0
        %289 = vmatprep.subr.bf16.mxu0 0
        %290 = vmatpush1.bf16.xpose.msra.mxu0 0
        %291 = vmatprep.subr.bf16.mxu0 0
        %292 = vmatpush1.bf16.xpose.msra.mxu0 0
        %293 = vmatprep.subr.bf16.mxu0 0
        %294 = vmatpush1.bf16.xpose.msra.mxu0 0
        %295 = vmatprep.subr.bf16.mxu0 0
        %296 = vmatpush1.bf16.xpose.msra.mxu0 0
        %297 = vmatprep.subr.bf16.mxu0 0
        %298 = vmatpush1.bf16.xpose.msra.mxu0 0
        %299 = vmatprep.subr.bf16.mxu0 0
        %300 = vmatpush1.bf16.xpose.msra.mxu0 0
        %301 = vmatprep.subr.bf16.mxu0 0
        %302 = vmatpush1.bf16.xpose.msra.mxu0 0
        %303 = vmatprep.subr.bf16.mxu0 0
        %304 = vmatpush1.bf16.xpose.msra.mxu0 0
        %305 = vmatprep.subr.bf16.mxu0 0
        %306 = vmatpush1.bf16.xpose.msra.mxu0 0
        %307 = vmatprep.subr.bf16.mxu0 0
        %308 = vmatpush1.bf16.xpose.msra.mxu0 0
        %309 = vmatprep.mubr.bf16.mxu0 0
        %310 = vmatmul.mubr.bf16.gmra.mrb[0].mxu0 %v272
        %v311 = vpop.f32.mrb[0].mxu0
        %v312 = vadd.f32 0.0, %v311
        %v313 = vpop.f32.mrb[0].mxu0
        %v314 = vpop.f32.mrb[0].mxu0
        %v315 = vpop.f32.mrb[0].mxu0
        %316 = vdwg.mxu0
        %v317 = vmul.f32 %v312, 0.35355338
        %v318 = vsel %vm156, %v317, -inf
        %319 = vmax.xlane.f32.xlu0 %v318
        %v320 = vpop.xlane.xlu0 %319
        %v321 = vsub.f32 %v317, %v320
        %v322 = vmul.f32 %v321, 1.442695
        %v323 = vpow.pop %v322
        %v324 = vsel %vm156, %v323, 0.0
        %325 = vadd.xlane.f32.xlu0 %v324
        %v326 = vpop.xlane.xlu0 %325
        %v327 = vrcp.pop %v326
        %v328 = vmul.f32 %v323, %v327
        %s329 = scalar_lea.vmem %s141, 8 [#allocation2]
        %330 = vst.msk [vmem:[%s329] sm:$0xff] %vm156, %v328
        %v331 = vpack.c.bf16 %v328, %v328
        %332 = vrot.lane.b32.xlu0 %v152, 56
        %v333 = vpop.permute.xlu0 %332
        %v335 = vsel %vm156, %v331, 0
        %v338 = vsel %vm222, %v333, 0
        %340 = vmatprep.subr.bf16.mxu0 0
        %341 = vmatpush1.bf16.msra.mxu0 %v338
        %342 = vmatprep.subr.bf16.mxu0 0
        %343 = vmatpush1.bf16.msra.mxu0 0
        %344 = vmatprep.subr.bf16.mxu0 0
        %345 = vmatpush1.bf16.msra.mxu0 0
        %346 = vmatprep.subr.bf16.mxu0 0
        %347 = vmatpush1.bf16.msra.mxu0 0
        %348 = vmatprep.subr.bf16.mxu0 0
        %349 = vmatpush1.bf16.msra.mxu0 0
        %350 = vmatprep.subr.bf16.mxu0 0
        %351 = vmatpush1.bf16.msra.mxu0 0
        %352 = vmatprep.subr.bf16.mxu0 0
        %353 = vmatpush1.bf16.msra.mxu0 0
        %354 = vmatprep.subr.bf16.mxu0 0
        %355 = vmatpush1.bf16.msra.mxu0 0
        %356 = vmatprep.subr.bf16.mxu0 0
        %357 = vmatpush1.bf16.msra.mxu0 0
        %358 = vmatprep.subr.bf16.mxu0 0
        %359 = vmatpush1.bf16.msra.mxu0 0
        %360 = vmatprep.subr.bf16.mxu0 0
        %361 = vmatpush1.bf16.msra.mxu0 0
        %362 = vmatprep.subr.bf16.mxu0 0
        %363 = vmatpush1.bf16.msra.mxu0 0
        %364 = vmatprep.subr.bf16.mxu0 0
        %365 = vmatpush1.bf16.msra.mxu0 0
        %366 = vmatprep.subr.bf16.mxu0 0
        %367 = vmatpush1.bf16.msra.mxu0 0
        %368 = vmatprep.subr.bf16.mxu0 0
        %369 = vmatpush1.bf16.msra.mxu0 0
        %370 = vmatprep.subr.bf16.mxu0 0
        %371 = vmatpush1.bf16.msra.mxu0 0
        %372 = vmatprep.mubr.bf16.mxu0 0
        %373 = vmatmul.mubr.bf16.gmra.mrb[0].mxu0 %v335
        %v374 = vpop.f32.mrb[0].mxu0
        %v375 = vadd.f32 0.0, %v374
        %v376 = vpop.f32.mrb[0].mxu0
        %v377 = vpop.f32.mrb[0].mxu0
        %v378 = vpop.f32.mrb[0].mxu0
        %379 = vdwg.mxu0
        %381 = vrot.lane.b32.xlu0 %v375, 8
        %v382 = vpop.permute.xlu0 %381
        %vm384 = vcmask 130112
        %385 = vst.msk [vmem:[%s149] sm:$0xff] %vm384, %v382
        %386 = vrot.lane.b32.xlu0 %v152, 112
        %v387 = vpop.permute.xlu0 %386
        %388 = vrot.lane.b32.xlu0 %v152, 80
        %v389 = vpop.permute.xlu0 %388
        %v391 = vsel %vm156, %v387, 0
        %v394 = vsel %vm156, %v389, 0
        %396 = vmatprep.subr.bf16.mxu0 0
        %397 = vmatpush1.bf16.xpose.msra.mxu0 %v394
        %398 = vmatprep.subr.bf16.mxu0 0
        %399 = vmatpush1.bf16.xpose.msra.mxu0 0
        %400 = vmatprep.subr.bf16.mxu0 0
        %401 = vmatpush1.bf16.xpose.msra.mxu0 0
        %402 = vmatprep.subr.bf16.mxu0 0
        %403 = vmatpush1.bf16.xpose.msra.mxu0 0
        %404 = vmatprep.subr.bf16.mxu0 0
        %405 = vmatpush1.bf16.xpose.msra.mxu0 0
        %406 = vmatprep.subr.bf16.mxu0 0
        %407 = vmatpush1.bf16.xpose.msra.mxu0 0
        %408 = vmatprep.subr.bf16.mxu0 0
        %409 = vmatpush1.bf16.xpose.msra.mxu0 0
        %410 = vmatprep.subr.bf16.mxu0 0
        %411 = vmatpush1.bf16.xpose.msra.mxu0 0
        %412 = vmatprep.subr.bf16.mxu0 0
        %413 = vmatpush1.bf16.xpose.msra.mxu0 0
        %414 = vmatprep.subr.bf16.mxu0 0
        %415 = vmatpush1.bf16.xpose.msra.mxu0 0
        %416 = vmatprep.subr.bf16.mxu0 0
        %417 = vmatpush1.bf16.xpose.msra.mxu0 0
        %418 = vmatprep.subr.bf16.mxu0 0
        %419 = vmatpush1.bf16.xpose.msra.mxu0 0
        %420 = vmatprep.subr.bf16.mxu0 0
        %421 = vmatpush1.bf16.xpose.msra.mxu0 0
        %422 = vmatprep.subr.bf16.mxu0 0
        %423 = vmatpush1.bf16.xpose.msra.mxu0 0
        %424 = vmatprep.subr.bf16.mxu0 0
        %425 = vmatpush1.bf16.xpose.msra.mxu0 0
        %426 = vmatprep.subr.bf16.mxu0 0
        %427 = vmatpush1.bf16.xpose.msra.mxu0 0
        %428 = vmatprep.mubr.bf16.mxu0 0
        %429 = vmatmul.mubr.bf16.gmra.mrb[0].mxu0 %v391
        %v430 = vpop.f32.mrb[0].mxu0
        %v431 = vadd.f32 0.0, %v430
        %v432 = vpop.f32.mrb[0].mxu0
        %v433 = vpop.f32.mrb[0].mxu0
        %v434 = vpop.f32.mrb[0].mxu0
        %435 = vdwg.mxu0
        %v436 = vmul.f32 %v431, 0.35355338
        %v437 = vsel %vm156, %v436, -inf
        %438 = vmax.xlane.f32.xlu0 %v437
        %v439 = vpop.xlane.xlu0 %438
        %v440 = vsub.f32 %v436, %v439
        %v441 = vmul.f32 %v440, 1.442695
        %v442 = vpow.pop %v441
        %v443 = vsel %vm156, %v442, 0.0
        %444 = vadd.xlane.f32.xlu0 %v443
        %v445 = vpop.xlane.xlu0 %444
        %v446 = vrcp.pop %v445
        %v447 = vmul.f32 %v442, %v446
        %s448 = scalar_lea.vmem %s141, 16 [#allocation2]
        %449 = vst.msk [vmem:[%s448] sm:$0xff] %vm156, %v447
        %v450 = vpack.c.bf16 %v447, %v447
        %451 = vrot.lane.b32.xlu0 %v152, 48
        %v452 = vpop.permute.xlu0 %451
        %v454 = vsel %vm156, %v450, 0
        %v457 = vsel %vm222, %v452, 0
        %459 = vmatprep.subr.bf16.mxu0 0
        %460 = vmatpush1.bf16.msra.mxu0 %v457
        %461 = vmatprep.subr.bf16.mxu0 0
        %462 = vmatpush1.bf16.msra.mxu0 0
        %463 = vmatprep.subr.bf16.mxu0 0
        %464 = vmatpush1.bf16.msra.mxu0 0
        %465 = vmatprep.subr.bf16.mxu0 0
        %466 = vmatpush1.bf16.msra.mxu0 0
        %467 = vmatprep.subr.bf16.mxu0 0
        %468 = vmatpush1.bf16.msra.mxu0 0
        %469 = vmatprep.subr.bf16.mxu0 0
        %470 = vmatpush1.bf16.msra.mxu0 0
        %471 = vmatprep.subr.bf16.mxu0 0
        %472 = vmatpush1.bf16.msra.mxu0 0
        %473 = vmatprep.subr.bf16.mxu0 0
        %474 = vmatpush1.bf16.msra.mxu0 0
        %475 = vmatprep.subr.bf16.mxu0 0
        %476 = vmatpush1.bf16.msra.mxu0 0
        %477 = vmatprep.subr.bf16.mxu0 0
        %478 = vmatpush1.bf16.msra.mxu0 0
        %479 = vmatprep.subr.bf16.mxu0 0
        %480 = vmatpush1.bf16.msra.mxu0 0
        %481 = vmatprep.subr.bf16.mxu0 0
        %482 = vmatpush1.bf16.msra.mxu0 0
        %483 = vmatprep.subr.bf16.mxu0 0
        %484 = vmatpush1.bf16.msra.mxu0 0
        %485 = vmatprep.subr.bf16.mxu0 0
        %486 = vmatpush1.bf16.msra.mxu0 0
        %487 = vmatprep.subr.bf16.mxu0 0
        %488 = vmatpush1.bf16.msra.mxu0 0
        %489 = vmatprep.subr.bf16.mxu0 0
        %490 = vmatpush1.bf16.msra.mxu0 0
        %491 = vmatprep.mubr.bf16.mxu0 0
        %492 = vmatmul.mubr.bf16.gmra.mrb[0].mxu0 %v454
        %v493 = vpop.f32.mrb[0].mxu0
        %v494 = vadd.f32 0.0, %v493
        %v495 = vpop.f32.mrb[0].mxu0
        %v496 = vpop.f32.mrb[0].mxu0
        %v497 = vpop.f32.mrb[0].mxu0
        %498 = vdwg.mxu0
        %500 = vrot.lane.b32.xlu0 %v494, 16
        %v501 = vpop.permute.xlu0 %500
        %vm503 = vcmask 195712
        %504 = vst.msk [vmem:[%s149] sm:$0xff] %vm503, %v501
        %505 = vrot.lane.b32.xlu0 %v152, 104
        %v506 = vpop.permute.xlu0 %505
        %507 = vrot.lane.b32.xlu0 %v152, 72
        %v508 = vpop.permute.xlu0 %507
        %v510 = vsel %vm156, %v506, 0
        %v513 = vsel %vm156, %v508, 0
        %515 = vmatprep.subr.bf16.mxu0 0
        %516 = vmatpush1.bf16.xpose.msra.mxu0 %v513
        %517 = vmatprep.subr.bf16.mxu0 0
        %518 = vmatpush1.bf16.xpose.msra.mxu0 0
        %519 = vmatprep.subr.bf16.mxu0 0
        %520 = vmatpush1.bf16.xpose.msra.mxu0 0
        %521 = vmatprep.subr.bf16.mxu0 0
        %522 = vmatpush1.bf16.xpose.msra.mxu0 0
        %523 = vmatprep.subr.bf16.mxu0 0
        %524 = vmatpush1.bf16.xpose.msra.mxu0 0
        %525 = vmatprep.subr.bf16.mxu0 0
        %526 = vmatpush1.bf16.xpose.msra.mxu0 0
        %527 = vmatprep.subr.bf16.mxu0 0
        %528 = vmatpush1.bf16.xpose.msra.mxu0 0
        %529 = vmatprep.subr.bf16.mxu0 0
        %530 = vmatpush1.bf16.xpose.msra.mxu0 0
        %531 = vmatprep.subr.bf16.mxu0 0
        %532 = vmatpush1.bf16.xpose.msra.mxu0 0
        %533 = vmatprep.subr.bf16.mxu0 0
        %534 = vmatpush1.bf16.xpose.msra.mxu0 0
        %535 = vmatprep.subr.bf16.mxu0 0
        %536 = vmatpush1.bf16.xpose.msra.mxu0 0
        %537 = vmatprep.subr.bf16.mxu0 0
        %538 = vmatpush1.bf16.xpose.msra.mxu0 0
        %539 = vmatprep.subr.bf16.mxu0 0
        %540 = vmatpush1.bf16.xpose.msra.mxu0 0
        %541 = vmatprep.subr.bf16.mxu0 0
        %542 = vmatpush1.bf16.xpose.msra.mxu0 0
        %543 = vmatprep.subr.bf16.mxu0 0
        %544 = vmatpush1.bf16.xpose.msra.mxu0 0
        %545 = vmatprep.subr.bf16.mxu0 0
        %546 = vmatpush1.bf16.xpose.msra.mxu0 0
        %547 = vmatprep.mubr.bf16.mxu0 0
        %548 = vmatmul.mubr.bf16.gmra.mrb[0].mxu0 %v510
        %v549 = vpop.f32.mrb[0].mxu0
        %v550 = vadd.f32 0.0, %v549
        %v551 = vpop.f32.mrb[0].mxu0
        %v552 = vpop.f32.mrb[0].mxu0
        %v553 = vpop.f32.mrb[0].mxu0
        %554 = vdwg.mxu0
        %v555 = vmul.f32 %v550, 0.35355338
        %v556 = vsel %vm156, %v555, -inf
        %557 = vmax.xlane.f32.xlu0 %v556
        %v558 = vpop.xlane.xlu0 %557
        %v559 = vsub.f32 %v555, %v558
        %v560 = vmul.f32 %v559, 1.442695
        %v561 = vpow.pop %v560
        %v562 = vsel %vm156, %v561, 0.0
        %563 = vadd.xlane.f32.xlu0 %v562
        %v564 = vpop.xlane.xlu0 %563
        %v565 = vrcp.pop %v564
        %v566 = vmul.f32 %v561, %v565
        %s567 = scalar_lea.vmem %s141, 24 [#allocation2]
        %568 = vst.msk [vmem:[%s567] sm:$0xff] %vm156, %v566
        %v569 = vpack.c.bf16 %v566, %v566
        %570 = vrot.lane.b32.xlu0 %v152, 40
        %v571 = vpop.permute.xlu0 %570
        %v573 = vsel %vm156, %v569, 0
        %v576 = vsel %vm222, %v571, 0
        %578 = vmatprep.subr.bf16.mxu0 0
        %579 = vmatpush1.bf16.msra.mxu0 %v576
        %580 = vmatprep.subr.bf16.mxu0 0
        %581 = vmatpush1.bf16.msra.mxu0 0
        %582 = vmatprep.subr.bf16.mxu0 0
        %583 = vmatpush1.bf16.msra.mxu0 0
        %584 = vmatprep.subr.bf16.mxu0 0
        %585 = vmatpush1.bf16.msra.mxu0 0
        %586 = vmatprep.subr.bf16.mxu0 0
        %587 = vmatpush1.bf16.msra.mxu0 0
        %588 = vmatprep.subr.bf16.mxu0 0
        %589 = vmatpush1.bf16.msra.mxu0 0
        %590 = vmatprep.subr.bf16.mxu0 0
        %591 = vmatpush1.bf16.msra.mxu0 0
        %592 = vmatprep.subr.bf16.mxu0 0
        %593 = vmatpush1.bf16.msra.mxu0 0
        %594 = vmatprep.subr.bf16.mxu0 0
        %595 = vmatpush1.bf16.msra.mxu0 0
        %596 = vmatprep.subr.bf16.mxu0 0
        %597 = vmatpush1.bf16.msra.mxu0 0
        %598 = vmatprep.subr.bf16.mxu0 0
        %599 = vmatpush1.bf16.msra.mxu0 0
        %600 = vmatprep.subr.bf16.mxu0 0
        %601 = vmatpush1.bf16.msra.mxu0 0
        %602 = vmatprep.subr.bf16.mxu0 0
        %603 = vmatpush1.bf16.msra.mxu0 0
        %604 = vmatprep.subr.bf16.mxu0 0
        %605 = vmatpush1.bf16.msra.mxu0 0
        %606 = vmatprep.subr.bf16.mxu0 0
        %607 = vmatpush1.bf16.msra.mxu0 0
        %608 = vmatprep.subr.bf16.mxu0 0
        %609 = vmatpush1.bf16.msra.mxu0 0
        %610 = vmatprep.mubr.bf16.mxu0 0
        %611 = vmatmul.mubr.bf16.gmra.mrb[0].mxu0 %v573
        %v612 = vpop.f32.mrb[0].mxu0
        %v613 = vadd.f32 0.0, %v612
        %v614 = vpop.f32.mrb[0].mxu0
        %v615 = vpop.f32.mrb[0].mxu0
        %v616 = vpop.f32.mrb[0].mxu0
        %617 = vdwg.mxu0
        %619 = vrot.lane.b32.xlu0 %v613, 24
        %v620 = vpop.permute.xlu0 %619
        %vm622 = vcmask 261312
        %623 = vst.msk [vmem:[%s149] sm:$0xff] %vm622, %v620
        %p624 = scmp.lt.s32.totalorder %s17, 1
        %s625 = scalar_select %p624, %s17, 1
        %s626 = smul.addr %s625, 8
        %s627 = scalar_lea.vmem %s1, %s626
        %s628 = sand.u32 %s77, 1
        %s629 = scalar_lea.sflag [#allocation3], %s628
        %s630 = sand.u32 %s77, 1
        %s631 = smul.addr %s630, 32
        %s632 = scalar_lea.vmem [#allocation2], %s631
        // Predicated region
        $region25: #{transformer_glu_forward.5} parent=23 // pred_check
          %p633 = pneg %p61
        $region26: #{transformer_glu_forward.5} parent=23 // pred_check_branch
          %635 = sbr.rel (%p633) target = $region28
        $region27: #{transformer_glu_forward.5} parent=23 // pred_region
          _
        $region28: #{transformer_glu_forward.5} parent=23 // pred_fallthru
          _
        // Predicated region
        $region29: #{transformer_glu_forward.5} parent=23 // pred_check
          %p636 = pneg %p87
        $region30: #{transformer_glu_forward.5} parent=23 // pred_check_branch
          %638 = sbr.rel (%p636) target = $region32
        $region31: #{transformer_glu_forward.5} parent=23 // pred_region
          %s640 = ssub.s32 512, 512
          %641 = vsyncadd %s629, %s640
          %s642 = smul.addr %s17, 4
          %s643 = smul.addr %s642, 128
          %s644 = scalar_lea.hbm %s2, %s643
          %s645 = sshll.u32 %s632, 4
          %s646 = int_to_ptr.vmem [resolvable:$true] %s645
          %651 = dma.vmem_to_hbm [thread:$0]  %s646, 512, %s644, %s629, 128, 128, 8
        $region32: #{transformer_glu_forward.5} parent=23 // pred_fallthru
          _
      $region24: #{transformer_glu_forward.5} parent=5 // pred_fallthru
        _
      %p652 = scmp.le.s32.totalorder 2, %s12
      // Predicated region
      $region33: #{transformer_glu_forward.5} parent=5 // pred_check
        %p653 = pneg %p652
      $region34: #{transformer_glu_forward.5} parent=5 // pred_check_branch
        %655 = sbr.rel (%p653) target = $region36
      $region35: #{transformer_glu_forward.5} parent=5 // pred_region
        %s656 = ssub.s32 %s12, 2
        // Predicated region
        $region37: #{transformer_glu_forward.5} parent=35 // pred_check
          %p657 = pneg %p67
        $region38: #{transformer_glu_forward.5} parent=35 // pred_check_branch
          %659 = sbr.rel (%p657) target = $region40
        $region39: #{transformer_glu_forward.5} parent=35 // pred_region
          %p660 = scmp.lt.s32.totalorder %s18, 1
          %s661 = scalar_select %p660, %s18, 1
          %s662 = smul.addr %s661, 8
          %s663 = scalar_lea.vmem %s1, %s662
        $region40: #{transformer_glu_forward.5} parent=35 // pred_fallthru
          _
        // Predicated region
        $region41: #{transformer_glu_forward.5} parent=35 // pred_check
          %p664 = pneg %p93
        $region42: #{transformer_glu_forward.5} parent=35 // pred_check_branch
          %666 = sbr.rel (%p664) target = $region44
        $region43: #{transformer_glu_forward.5} parent=35 // pred_region
          %s667 = sand.u32 %s78, 1
          %s668 = scalar_lea.sflag [#allocation3], %s667
          %s669 = sand.u32 %s78, 1
          %s670 = smul.addr %s669, 32
          %s671 = scalar_lea.vmem [#allocation2], %s670
          %672 = dma.done %s668, 512
        $region44: #{transformer_glu_forward.5} parent=35 // pred_fallthru
          _
      $region36: #{transformer_glu_forward.5} parent=5 // pred_fallthru
        _
    $region6: #{transformer_glu_forward.5} parent=1 // loop_footer
      %s16 = sadd.s32 1, %s12
    $region7: #{transformer_glu_forward.5} parent=1 // loop_footer_branch
      %11 = sbr.rel target = $region3
    $region8: #{transformer_glu_forward.5} parent=1 // loop_exit
      _
    %673 = vsyncpa [#allocation3], 1
    %s674 = scalar_lea.sflag [#allocation3], 1
    %675 = vsyncpa %s674, 1

</llo_original>
